<compile_context>
chip_gen: v7x
topology: tpu7x:2x2x1
jax: 0.10.0
libtpu: 0.0.40
codegen_flags: <defaults>
</compile_context>

<pallas_src>
import functools

import jax
import jax.numpy as jnp
from jax.experimental import pallas as pl
from jax.experimental.pallas import tpu as pltpu

HIDDEN = 768
FC1 = 512
FC2 = 256


def _round_up(x, m):
    return ((x + m - 1) // m) * m


def bert_head_kernel(cls_ref, w1_ref, b1_ref, w2_ref, b2_ref, w3_ref, b3_ref,
                     out_ref, *, num_classes):
    """Fused fc1 -> relu -> fc2 -> relu -> fc3 -> log_softmax(dim=1).

    Activations arrive bf16; matmuls run with bf16 operands (f32 accumulate);
    bias add, ReLU and log-softmax stay in f32 (v5e has no bf16 VPU/EUP).
    Intermediate activations are stored bf16 to halve VMEM traffic.
    """
    x = cls_ref[...]                                            # (TM, 768) bf16

    # fc1 + ReLU  (dropout = identity at inference)
    h1 = jnp.dot(x, w1_ref[...], preferred_element_type=jnp.float32)
    h1 = jnp.maximum(h1 + b1_ref[...], 0.0).astype(jnp.bfloat16)

    # fc2 + ReLU
    h2 = jnp.dot(h1, w2_ref[...], preferred_element_type=jnp.float32)
    h2 = jnp.maximum(h2 + b2_ref[...], 0.0).astype(jnp.bfloat16)

    # fc3 (class dim is lane-padded to a multiple of 128 for dense stores)
    logits = jnp.dot(h2, w3_ref[...], preferred_element_type=jnp.float32)
    logits = logits + b3_ref[...]

    # Mask the padded classes so they do not contribute to max / normalizer.
    col = jax.lax.broadcasted_iota(jnp.int32, logits.shape, 1)
    logits = jnp.where(col < num_classes, logits, -1e30)

    # LogSoftmax over dim=1 (classes); exp/log land on the EUP slot.
    m = jnp.max(logits, axis=1, keepdims=True)
    shifted = logits - m
    lse = jnp.log(jnp.sum(jnp.exp(shifted), axis=1, keepdims=True))
    out_ref[...] = shifted - lse


def prepare_head_params(w1, b1, w2, b2, w3, b3):
    """One-time (model-init) cast/pad of the head parameters.

    Weights -> bf16 (MXU operands), biases -> f32, fc3 weight/bias lane-padded
    to a multiple of 128 classes.  Done once, not per forward call.
    """
    num_classes = w3.shape[1]
    c_pad = 128 * pl.cdiv(num_classes, 128)
    return {
        "w1": w1.astype(jnp.bfloat16),
        "b1": b1.reshape(1, FC1).astype(jnp.float32),
        "w2": w2.astype(jnp.bfloat16),
        "b2": b2.reshape(1, FC2).astype(jnp.float32),
        "w3": jnp.pad(w3, ((0, 0), (0, c_pad - num_classes))).astype(jnp.bfloat16),
        "b3": jnp.pad(b3.reshape(1, -1),
                      ((0, 0), (0, c_pad - num_classes))).astype(jnp.float32),
        "num_classes": num_classes,
        "c_pad": c_pad,
    }


def bert_arch_head(cls_hs, params, *, tm=1024):
    """Pallas wrapper: batch-tiled grid, VMEM-resident weights, bf16 inputs."""
    B = cls_hs.shape[0]
    num_classes = params["num_classes"]
    c_pad = params["c_pad"]

    # Producers should already emit bf16 (fake_bert_cls does); cast only if not.
    x = cls_hs if cls_hs.dtype == jnp.bfloat16 else cls_hs.astype(jnp.bfloat16)

    # Batch tile: multiple of 16 (bf16 sublane packing), no waste at tiny B.
    tm = max(16, min(tm, _round_up(B, 16)))
    n_steps = pl.cdiv(B, tm)
    # v7x megacore: a large single-tile batch would leave one TensorCore idle;
    # split it so the "parallel" axis has >= 2 steps to shard.
    if n_steps == 1 and B >= 256:
        tm = _round_up(pl.cdiv(B, 2), 16)
        n_steps = pl.cdiv(B, tm)

    grid = (n_steps,)
    const_idx = lambda i: (0, 0)      # weights/biases stay VMEM-resident

    def const_spec(shape):
        # Constant-index operands: single-buffer (2nd buffer is dead VMEM/DMA).
        try:
            return pl.BlockSpec(shape, const_idx, pipeline_mode=pl.Buffered(1))
        except TypeError:  # pipeline_mode unavailable in this JAX build
            return pl.BlockSpec(shape, const_idx)

    rows = n_steps * tm   # work actually scheduled (incl. masked tail rows)
    flops = 2 * rows * (HIDDEN * FC1 + FC1 * FC2 + FC2 * c_pad)
    bytes_accessed = (B * HIDDEN * 2                              # bf16 acts
                      + (params["w1"].size + params["w2"].size
                         + params["w3"].size) * 2                 # bf16 weights
                      + (params["b1"].size + params["b2"].size
                         + params["b3"].size) * 4                 # f32 biases
                      + B * c_pad * 4)                            # f32 out

    out = pl.pallas_call(
        functools.partial(bert_head_kernel, num_classes=num_classes),
        out_shape=jax.ShapeDtypeStruct((B, c_pad), jnp.float32),
        grid=grid,
        in_specs=[
            pl.BlockSpec((tm, HIDDEN), lambda i: (i, 0)),   # activations: tiled
            const_spec((HIDDEN, FC1)),
            const_spec((1, FC1)),
            const_spec((FC1, FC2)),
            const_spec((1, FC2)),
            const_spec((FC2, c_pad)),
            const_spec((1, c_pad)),
        ],
        out_specs=pl.BlockSpec((tm, c_pad), lambda i: (i, 0)),
        compiler_params=pltpu.CompilerParams(
            dimension_semantics=("parallel",),
            vmem_limit_bytes=32 * 1024 * 1024),
        cost_estimate=pl.CostEstimate(
            flops=flops,
            transcendentals=rows * (c_pad + 1),
            bytes_accessed=bytes_accessed),
    )(x, params["w1"], params["b1"], params["w2"], params["b2"],
      params["w3"], params["b3"])

    return out[:, :num_classes]


def fake_bert_cls(sent_id, mask, emb_table):
    """Deterministic stand-in for `self.bert(sent_id, attention_mask=mask)[0][:, 0]`.

    Embedding lookup + attention-mask-weighted mean pooling -> (B, 768) bf16
    (cast fused into the producer so the head kernel gets bf16 directly).
    """
    emb = emb_table[sent_id]                                    # (B, S, 768)
    m = mask.astype(jnp.float32)[..., None]                     # (B, S, 1)
    pooled = jnp.sum(emb * m, axis=1) / jnp.maximum(jnp.sum(m, axis=1), 1.0)
    return pooled.astype(jnp.bfloat16)                          # (B, 768) bf16


def reference_head(cls_hs, w1, b1, w2, b2, w3, b3):
    """Pure-JAX reference mirroring the kernel's bf16-operand / f32-accum math."""
    x = cls_hs.astype(jnp.bfloat16)
    h1 = jnp.maximum(
        jnp.dot(x, w1.astype(jnp.bfloat16),
                preferred_element_type=jnp.float32) + b1.reshape(1, -1), 0.0)
    h2 = jnp.maximum(
        jnp.dot(h1.astype(jnp.bfloat16), w2.astype(jnp.bfloat16),
                preferred_element_type=jnp.float32) + b2.reshape(1, -1), 0.0)
    logits = jnp.dot(h2.astype(jnp.bfloat16), w3.astype(jnp.bfloat16),
                     preferred_element_type=jnp.float32) + b3.reshape(1, -1)
    return jax.nn.log_softmax(logits, axis=1)


if __name__ == "__main__":
    B = 2          # batch
    S = 8          # sequence length
    VOCAB = 32
    NUM_CLASSES = 10  # `size`

    key = jax.random.PRNGKey(0)
    k_ids, k_emb, k_w1, k_b1, k_w2, k_b2, k_w3, k_b3 = jax.random.split(key, 8)

    # Inputs consistent with forward(sent_id, mask)
    sent_id = jax.random.randint(k_ids, (B, S), 0, VOCAB, dtype=jnp.int32)
    mask = jnp.ones((B, S), dtype=jnp.int32).at[:, S - 2:].set(0)  # some padding

    # Deterministic parameters (Linear weights stored as (in, out) => y = x@W + b)
    emb_table = 0.02 * jax.random.normal(k_emb, (VOCAB, HIDDEN), jnp.float32)
    w1 = 0.02 * jax.random.normal(k_w1, (HIDDEN, FC1), jnp.float32)
    b1 = 0.01 * jax.random.normal(k_b1, (1, FC1), jnp.float32)
    w2 = 0.02 * jax.random.normal(k_w2, (FC1, FC2), jnp.float32)
    b2 = 0.01 * jax.random.normal(k_b2, (1, FC2), jnp.float32)
    w3 = 0.02 * jax.random.normal(k_w3, (FC2, NUM_CLASSES), jnp.float32)
    b3 = 0.01 * jax.random.normal(k_b3, (1, NUM_CLASSES), jnp.float32)

    # BERT stand-in (plain JAX glue) — emits bf16 so no extra cast pass.
    cls_hs = fake_bert_cls(sent_id, mask, emb_table)             # (B, 768) bf16

    # One-time parameter prep (cast/pad hoisted out of the per-call path).
    head_params = prepare_head_params(w1, b1, w2, b2, w3, b3)

    # Pallas kernel: fused classification head
    out = bert_arch_head(cls_hs, head_params)
    out = jax.block_until_ready(out)

    ref = reference_head(cls_hs, w1, b1, w2, b2, w3, b3)
    assert out.shape == (B, NUM_CLASSES)
    assert jnp.allclose(out, ref, atol=2e-3, rtol=2e-3), "mismatch vs reference"
    # log-softmax rows must sum (in prob space) to 1
    assert jnp.allclose(jnp.sum(jnp.exp(out), axis=1), 1.0, atol=1e-4)

    print("KERNEL_OK")
</pallas_src>

<mosaic_0001>
module attributes {stable_mosaic.version = 11 : i64} {
  func.func @bert_head_kernel(%arg0: i32, %arg1: memref<16x768xbf16, #tpu.memory_space<vmem>>, %arg2: memref<768x512xbf16, #tpu.memory_space<vmem>>, %arg3: memref<1x512xf32, #tpu.memory_space<vmem>>, %arg4: memref<512x256xbf16, #tpu.memory_space<vmem>>, %arg5: memref<1x256xf32, #tpu.memory_space<vmem>>, %arg6: memref<256x128xbf16, #tpu.memory_space<vmem>>, %arg7: memref<1x128xf32, #tpu.memory_space<vmem>>, %arg8: memref<16x128xf32, #tpu.memory_space<vmem>>) attributes {dimension_semantics = [#tpu.dimension_semantics<parallel>], iteration_bounds = array<i64: 1>, scalar_prefetch = 0 : i64, scratch_operands = 0 : i64, tpu.core_type = #tpu.core_type<tc>, window_params = [{transform_indices = @transform_0, window_bounds = array<i64: 16, 768>}, {pipeline_mode = #tpu.pipeline_mode<synchronous>, transform_indices = @transform_1, window_bounds = array<i64: 768, 512>}, {pipeline_mode = #tpu.pipeline_mode<synchronous>, transform_indices = @transform_2, window_bounds = array<i64: 1, 512>}, {pipeline_mode = #tpu.pipeline_mode<synchronous>, transform_indices = @transform_3, window_bounds = array<i64: 512, 256>}, {pipeline_mode = #tpu.pipeline_mode<synchronous>, transform_indices = @transform_4, window_bounds = array<i64: 1, 256>}, {pipeline_mode = #tpu.pipeline_mode<synchronous>, transform_indices = @transform_5, window_bounds = array<i64: 256, 128>}, {pipeline_mode = #tpu.pipeline_mode<synchronous>, transform_indices = @transform_6, window_bounds = array<i64: 1, 128>}, {transform_indices = @transform_7, window_bounds = array<i64: 16, 128>}]} {
    %c0 = arith.constant 0 : index
    %c0_0 = arith.constant 0 : index
    %0 = vector.load %arg1[%c0, %c0_0] : memref<16x768xbf16, #tpu.memory_space<vmem>>, vector<16x768xbf16>
    %c0_1 = arith.constant 0 : index
    %c0_2 = arith.constant 0 : index
    %1 = vector.load %arg2[%c0_1, %c0_2] : memref<768x512xbf16, #tpu.memory_space<vmem>>, vector<768x512xbf16>
    %cst = arith.constant dense<0.000000e+00> : vector<16x512xf32>
    %2 = tpu.matmul %0, %1, %cst {dimension_numbers = #tpu.dot_dimension_numbers<[1], [0], [0], [1], [0, 0, 1, 1], [], []>} : vector<16x768xbf16>, vector<768x512xbf16>, vector<16x512xf32> -> vector<16x512xf32>
    %c0_3 = arith.constant 0 : index
    %c0_4 = arith.constant 0 : index
    %3 = vector.load %arg3[%c0_3, %c0_4] : memref<1x512xf32, #tpu.memory_space<vmem>>, vector<1x512xf32>
    %4 = vector.broadcast %3 : vector<1x512xf32> to vector<16x512xf32>
    %5 = arith.addf %2, %4 : vector<16x512xf32>
    %cst_5 = arith.constant 0.000000e+00 : f32
    %6 = vector.broadcast %cst_5 : f32 to vector<16x512xf32>
    %7 = arith.maximumf %5, %6 : vector<16x512xf32>
    %8 = arith.truncf %7 : vector<16x512xf32> to vector<16x512xbf16>
    %c0_6 = arith.constant 0 : index
    %c0_7 = arith.constant 0 : index
    %9 = vector.load %arg4[%c0_6, %c0_7] : memref<512x256xbf16, #tpu.memory_space<vmem>>, vector<512x256xbf16>
    %cst_8 = arith.constant dense<0.000000e+00> : vector<16x256xf32>
    %10 = tpu.matmul %8, %9, %cst_8 {dimension_numbers = #tpu.dot_dimension_numbers<[1], [0], [0], [1], [0, 0, 1, 1], [], []>} : vector<16x512xbf16>, vector<512x256xbf16>, vector<16x256xf32> -> vector<16x256xf32>
    %c0_9 = arith.constant 0 : index
    %c0_10 = arith.constant 0 : index
    %11 = vector.load %arg5[%c0_9, %c0_10] : memref<1x256xf32, #tpu.memory_space<vmem>>, vector<1x256xf32>
    %12 = vector.broadcast %11 : vector<1x256xf32> to vector<16x256xf32>
    %13 = arith.addf %10, %12 : vector<16x256xf32>
    %cst_11 = arith.constant 0.000000e+00 : f32
    %14 = vector.broadcast %cst_11 : f32 to vector<16x256xf32>
    %15 = arith.maximumf %13, %14 : vector<16x256xf32>
    %16 = arith.truncf %15 : vector<16x256xf32> to vector<16x256xbf16>
    %c0_12 = arith.constant 0 : index
    %c0_13 = arith.constant 0 : index
    %17 = vector.load %arg6[%c0_12, %c0_13] : memref<256x128xbf16, #tpu.memory_space<vmem>>, vector<256x128xbf16>
    %cst_14 = arith.constant dense<0.000000e+00> : vector<16x128xf32>
    %18 = tpu.matmul %16, %17, %cst_14 {dimension_numbers = #tpu.dot_dimension_numbers<[1], [0], [0], [1], [0, 0, 1, 1], [], []>} : vector<16x256xbf16>, vector<256x128xbf16>, vector<16x128xf32> -> vector<16x128xf32>
    %c0_15 = arith.constant 0 : index
    %c0_16 = arith.constant 0 : index
    %19 = vector.load %arg7[%c0_15, %c0_16] : memref<1x128xf32, #tpu.memory_space<vmem>>, vector<1x128xf32>
    %20 = vector.broadcast %19 : vector<1x128xf32> to vector<16x128xf32>
    %21 = arith.addf %18, %20 : vector<16x128xf32>
    %22 = tpu.iota {dimensions = array<i32: 1>} : vector<16x128xi32>
    %c10_i32 = arith.constant 10 : i32
    %23 = vector.broadcast %c10_i32 : i32 to vector<16x128xi32>
    %24 = arith.cmpi slt, %22, %23 : vector<16x128xi32>
    %cst_17 = arith.constant -1.000000e+30 : f32
    %25 = vector.broadcast %cst_17 : f32 to vector<16x128xf32>
    %26 = arith.select %24, %21, %25 : vector<16x128xi1>, vector<16x128xf32>
    %cst_18 = arith.constant dense<0xFF800000> : vector<16xf32>
    %27 = vector.multi_reduction <maximumf>, %26, %cst_18 [1] : vector<16x128xf32> to vector<16xf32>
    %28 = vector.shape_cast %27 : vector<16xf32> to vector<16x1xf32>
    %29 = vector.broadcast %28 : vector<16x1xf32> to vector<16x128xf32>
    %30 = arith.subf %26, %29 : vector<16x128xf32>
    %31 = math.exp %30 : vector<16x128xf32>
    %cst_19 = arith.constant dense<0.000000e+00> : vector<16xf32>
    %32 = vector.multi_reduction <add>, %31, %cst_19 [1] : vector<16x128xf32> to vector<16xf32>
    %33 = vector.shape_cast %32 : vector<16xf32> to vector<16x1xf32>
    %34 = math.log %33 : vector<16x1xf32>
    %35 = vector.broadcast %34 : vector<16x1xf32> to vector<16x128xf32>
    %36 = arith.subf %30, %35 : vector<16x128xf32>
    %c0_20 = arith.constant 0 : index
    %c0_21 = arith.constant 0 : index
    %37 = vector.load %arg8[%c0_20, %c0_21] : memref<16x128xf32, #tpu.memory_space<vmem>>, vector<16x128xf32>
    tpu.vector_store %arg8[%c0_20, %c0_21], %36 {strides = array<i32>} : memref<16x128xf32, #tpu.memory_space<vmem>>, vector<16x128xf32>,
    return
  }
  func.func @transform_0(%arg0: i32) -> (i32, i32) {
    %c0_i32 = arith.constant 0 : i32
    %c0_i32_0 = arith.constant 0 : i32
    return %arg0, %c0_i32 : i32, i32
  }
  func.func @transform_1(%arg0: i32) -> (i32, i32) {
    %c0_i32 = arith.constant 0 : i32
    %c0_i32_0 = arith.constant 0 : i32
    %c0_i32_1 = arith.constant 0 : i32
    return %c0_i32, %c0_i32_0 : i32, i32
  }
  func.func @transform_2(%arg0: i32) -> (i32, i32) {
    %c0_i32 = arith.constant 0 : i32
    %c0_i32_0 = arith.constant 0 : i32
    %c0_i32_1 = arith.constant 0 : i32
    return %c0_i32, %c0_i32_0 : i32, i32
  }
  func.func @transform_3(%arg0: i32) -> (i32, i32) {
    %c0_i32 = arith.constant 0 : i32
    %c0_i32_0 = arith.constant 0 : i32
    %c0_i32_1 = arith.constant 0 : i32
    return %c0_i32, %c0_i32_0 : i32, i32
  }
  func.func @transform_4(%arg0: i32) -> (i32, i32) {
    %c0_i32 = arith.constant 0 : i32
    %c0_i32_0 = arith.constant 0 : i32
    %c0_i32_1 = arith.constant 0 : i32
    return %c0_i32, %c0_i32_0 : i32, i32
  }
  func.func @transform_5(%arg0: i32) -> (i32, i32) {
    %c0_i32 = arith.constant 0 : i32
    %c0_i32_0 = arith.constant 0 : i32
    %c0_i32_1 = arith.constant 0 : i32
    return %c0_i32, %c0_i32_0 : i32, i32
  }
  func.func @transform_6(%arg0: i32) -> (i32, i32) {
    %c0_i32 = arith.constant 0 : i32
    %c0_i32_0 = arith.constant 0 : i32
    %c0_i32_1 = arith.constant 0 : i32
    return %c0_i32, %c0_i32_0 : i32, i32
  }
  func.func @transform_7(%arg0: i32) -> (i32, i32) {
    %c0_i32 = arith.constant 0 : i32
    %c0_i32_0 = arith.constant 0 : i32
    return %arg0, %c0_i32 : i32, i32
  }
}

</mosaic_0001>

<llo_original>
// kernel: tpu_custom_call.1
$region0: #{tpu_custom_call.1}
  #allocation0 [shape = 'u32[]', space=smem, size = 0x4, offset = 0x4, fixed_abs, tag = 'smem constant byte address 0x4 - core index']
  #allocation1 [shape = 'u32[144,128]{1,0:T(1,128)}', space=vmem, size = 0x12000, scoped, tag = 'internal scratch']
  %s0 = inlined_call_operand.hbm [shape: bf16[2,768], index: 0, kind: input, shape index: {}]
  %s1 = inlined_call_operand.hbm [shape: bf16[768,512], index: 1, kind: input, shape index: {}]
  %s2 = inlined_call_operand.vmem [shape: f32[1,512], index: 2, kind: input, shape index: {}]
  %s3 = inlined_call_operand.hbm [shape: bf16[512,256], index: 3, kind: input, shape index: {}]
  %s4 = inlined_call_operand.vmem [shape: f32[1,256], index: 4, kind: input, shape index: {}]
  %s5 = inlined_call_operand.hbm [shape: bf16[256,128], index: 5, kind: input, shape index: {}]
  %s6 = inlined_call_operand.vmem [shape: f32[1,128], index: 6, kind: input, shape index: {}]
  %s7 = inlined_call_operand.hbm [shape: f32[2,128], index: 7, kind: output, shape index: {}]
  %s8 = sld [smem:[#allocation0]]
  $region54: #{tpu_custom_call.1} parent=0
    _
  %s10 = ssub.s32 1, %s8
  %s11 = scalar_select 0, %s10, %s8
  $region1: #{tpu_custom_call.1} parent=0
    #allocation2 [shape = 'u8[24576]{0}', space=vmem, size = 0x6000, scoped, tag = 'input window, operand 0, single buffered']
    #allocation3 [shape = 's32[1]{0}', space=sflag, size = 0x4, scoped, tag = 'scoped memory for tpu_custom_call.1']
    #allocation4 [shape = 's32[1]{0}', space=sflag, size = 0x4, scoped, tag = 'scoped memory for tpu_custom_call.1']
    #allocation5 [shape = 'u8[786432]{0}', space=vmem, size = 0xc0000, scoped, tag = 'input window, operand 1, single buffered']
    #allocation6 [shape = 's32[1]{0}', space=sflag, size = 0x4, scoped, tag = 'scoped memory for tpu_custom_call.1']
    #allocation7 [shape = 'u8[262144]{0}', space=vmem, size = 0x40000, scoped, tag = 'input window, operand 3, single buffered']
    #allocation8 [shape = 'u8[65536]{0}', space=vmem, size = 0x10000, scoped, tag = 'input window, operand 5, single buffered']
    #allocation9 [shape = 's32[1]{0}', space=sflag, size = 0x4, scoped, tag = 'scoped memory for tpu_custom_call.1']
    #allocation10 [shape = 'u8[8192]{0}', space=vmem, size = 0x2000, scoped, tag = 'output window, operand 0, single buffered']
    %12 = vsyncpa [#allocation3], 0
    %13 = vsyncpa [#allocation6], 0
    %14 = vsyncpa [#allocation9], 0
    %15 = vsyncpa [#allocation4], 0
    // Predicated region
    $region2: #{tpu_custom_call.1} parent=1 // pred_check
      _
    $region3: #{tpu_custom_call.1} parent=1 // pred_check_branch
      %17 = sbr.rel (0) target = $region5
    $region4: #{tpu_custom_call.1} parent=1 // pred_region
      %s19 = ssub.s32 768, 96
      %20 = vsyncadd [#allocation3], %s19
      %s21 = sshll.u32 [#allocation2], 4
      %s22 = int_to_ptr.vmem [resolvable:$true] %s21
      %27 = dma.hbm_to_vmem [thread:$0]  %s0, 96, %s22, [#allocation3], 96, 96, 6
    $region5: #{tpu_custom_call.1} parent=1 // pred_fallthru
      _
    // Predicated region
    $region6: #{tpu_custom_call.1} parent=1 // pred_check
      _
    $region7: #{tpu_custom_call.1} parent=1 // pred_check_branch
      %29 = sbr.rel (0) target = $region9
    $region8: #{tpu_custom_call.1} parent=1 // pred_region
      %s31 = ssub.s32 24576, 24576
      %32 = vsyncadd [#allocation6], %s31
      %s33 = sshll.u32 [#allocation5], 4
      %s34 = int_to_ptr.vmem [resolvable:$true] %s33
      %39 = dma.hbm_to_vmem [thread:$0]  %s1, 24576, %s34, [#allocation6], 256, 256, 16
    $region9: #{tpu_custom_call.1} parent=1 // pred_fallthru
      _
    // Predicated region
    $region10: #{tpu_custom_call.1} parent=1 // pred_check
      _
    $region11: #{tpu_custom_call.1} parent=1 // pred_check_branch
      %41 = sbr.rel (0) target = $region13
    $region12: #{tpu_custom_call.1} parent=1 // pred_region
      _
    $region13: #{tpu_custom_call.1} parent=1 // pred_fallthru
      _
    // Predicated region
    $region14: #{tpu_custom_call.1} parent=1 // pred_check
      _
    $region15: #{tpu_custom_call.1} parent=1 // pred_check_branch
      %43 = sbr.rel (0) target = $region17
    $region16: #{tpu_custom_call.1} parent=1 // pred_region
      %s45 = ssub.s32 8192, 8192
      %46 = vsyncadd [#allocation6], %s45
      %s47 = sshll.u32 [#allocation7], 4
      %s48 = int_to_ptr.vmem [resolvable:$true] %s47
      %53 = dma.hbm_to_vmem [thread:$0]  %s3, 8192, %s48, [#allocation6], 128, 128, 8
    $region17: #{tpu_custom_call.1} parent=1 // pred_fallthru
      _
    // Predicated region
    $region18: #{tpu_custom_call.1} parent=1 // pred_check
      _
    $region19: #{tpu_custom_call.1} parent=1 // pred_check_branch
      %55 = sbr.rel (0) target = $region21
    $region20: #{tpu_custom_call.1} parent=1 // pred_region
      _
    $region21: #{tpu_custom_call.1} parent=1 // pred_fallthru
      _
    // Predicated region
    $region22: #{tpu_custom_call.1} parent=1 // pred_check
      _
    $region23: #{tpu_custom_call.1} parent=1 // pred_check_branch
      %57 = sbr.rel (0) target = $region25
    $region24: #{tpu_custom_call.1} parent=1 // pred_region
      %s59 = ssub.s32 2048, 2048
      %60 = vsyncadd [#allocation9], %s59
      %s61 = sshll.u32 [#allocation8], 4
      %s62 = int_to_ptr.vmem [resolvable:$true] %s61
      %67 = dma.hbm_to_vmem [thread:$0]  %s5, 2048, %s62, [#allocation9], 64, 64, 4
    $region25: #{tpu_custom_call.1} parent=1 // pred_fallthru
      _
    // Predicated region
    $region26: #{tpu_custom_call.1} parent=1 // pred_check
      _
    $region27: #{tpu_custom_call.1} parent=1 // pred_check_branch
      %69 = sbr.rel (0) target = $region29
    $region28: #{tpu_custom_call.1} parent=1 // pred_region
      _
    $region29: #{tpu_custom_call.1} parent=1 // pred_fallthru
      _
    // Predicated region
    $region30: #{tpu_custom_call.1} parent=1 // pred_check
      _
    $region31: #{tpu_custom_call.1} parent=1 // pred_check_branch
      %71 = sbr.rel (0) target = $region33
    $region32: #{tpu_custom_call.1} parent=1 // pred_region
      %72 = dma.done [#allocation3], 768
    $region33: #{tpu_custom_call.1} parent=1 // pred_fallthru
      _
    // Predicated region
    $region34: #{tpu_custom_call.1} parent=1 // pred_check
      _
    $region35: #{tpu_custom_call.1} parent=1 // pred_check_branch
      %74 = sbr.rel (0) target = $region37
    $region36: #{tpu_custom_call.1} parent=1 // pred_region
      %75 = dma.done [#allocation6], 24576
    $region37: #{tpu_custom_call.1} parent=1 // pred_fallthru
      _
    // Predicated region
    $region38: #{tpu_custom_call.1} parent=1 // pred_check
      _
    $region39: #{tpu_custom_call.1} parent=1 // pred_check_branch
      %77 = sbr.rel (0) target = $region41
    $region40: #{tpu_custom_call.1} parent=1 // pred_region
      %78 = dma.done [#allocation6], 8192
    $region41: #{tpu_custom_call.1} parent=1 // pred_fallthru
      _
    // Predicated region
    $region42: #{tpu_custom_call.1} parent=1 // pred_check
      _
    $region43: #{tpu_custom_call.1} parent=1 // pred_check_branch
      %80 = sbr.rel (0) target = $region45
    $region44: #{tpu_custom_call.1} parent=1 // pred_region
      %81 = dma.done [#allocation9], 2048
    $region45: #{tpu_custom_call.1} parent=1 // pred_fallthru
      _
    %v83 = vld [vmem:[#allocation2] sm:$0x3f]
    %v84 = vld [vmem:[#allocation2 + $0x6] sm:$0x3f]
    %v85 = vld [vmem:[#allocation2 + $0xc] sm:$0x3f]
    %v86 = vld [vmem:[#allocation2 + $0x12] sm:$0x3f]
    %v87 = vld [vmem:[#allocation2 + $0x18] sm:$0x3f]
    %v88 = vld [vmem:[#allocation2 + $0x1e] sm:$0x3f]
    %v89 = vld [vmem:[#allocation2 + $0x24] sm:$0x3f]
    %v90 = vld [vmem:[#allocation2 + $0x2a] sm:$0x3f]
    %v91 = vld [vmem:[#allocation5] sm:$0xff]
    %v92 = vld [vmem:[#allocation5 + $0x8] sm:$0xff]
    %v93 = vld [vmem:[#allocation5 + $0x10] sm:$0xff]
    %v94 = vld [vmem:[#allocation5 + $0x18] sm:$0xff]
    %v95 = vld [vmem:[#allocation5 + $0x20] sm:$0xff]
    %v96 = vld [vmem:[#allocation5 + $0x28] sm:$0xff]
    %v97 = vld [vmem:[#allocation5 + $0x30] sm:$0xff]
    %v98 = vld [vmem:[#allocation5 + $0x38] sm:$0xff]
    %v99 = vld [vmem:[#allocation5 + $0x40] sm:$0xff]
    %v100 = vld [vmem:[#allocation5 + $0x48] sm:$0xff]
    %v101 = vld [vmem:[#allocation5 + $0x50] sm:$0xff]
    %v102 = vld [vmem:[#allocation5 + $0x58] sm:$0xff]
    %v103 = vld [vmem:[#allocation5 + $0x60] sm:$0xff]
    %v104 = vld [vmem:[#allocation5 + $0x68] sm:$0xff]
    %v105 = vld [vmem:[#allocation5 + $0x70] sm:$0xff]
    %v106 = vld [vmem:[#allocation5 + $0x78] sm:$0xff]
    %v107 = vld [vmem:[#allocation5 + $0x80] sm:$0xff]
    %v108 = vld [vmem:[#allocation5 + $0x88] sm:$0xff]
    %v109 = vld [vmem:[#allocation5 + $0x90] sm:$0xff]
    %v110 = vld [vmem:[#allocation5 + $0x98] sm:$0xff]
    %v111 = vld [vmem:[#allocation5 + $0xa0] sm:$0xff]
    %v112 = vld [vmem:[#allocation5 + $0xa8] sm:$0xff]
    %v113 = vld [vmem:[#allocation5 + $0xb0] sm:$0xff]
    %v114 = vld [vmem:[#allocation5 + $0xb8] sm:$0xff]
    %v115 = vld [vmem:[#allocation5 + $0xc0] sm:$0xff]
    %v116 = vld [vmem:[#allocation5 + $0xc8] sm:$0xff]
    %v117 = vld [vmem:[#allocation5 + $0xd0] sm:$0xff]
    %v118 = vld [vmem:[#allocation5 + $0xd8] sm:$0xff]
    %v119 = vld [vmem:[#allocation5 + $0xe0] sm:$0xff]
    %v120 = vld [vmem:[#allocation5 + $0xe8] sm:$0xff]
    %v121 = vld [vmem:[#allocation5 + $0xf0] sm:$0xff]
    %v122 = vld [vmem:[#allocation5 + $0xf8] sm:$0xff]
    %v123 = vld [vmem:[#allocation5 + $0x100] sm:$0xff]
    %v124 = vld [vmem:[#allocation5 + $0x108] sm:$0xff]
    %v125 = vld [vmem:[#allocation5 + $0x110] sm:$0xff]
    %v126 = vld [vmem:[#allocation5 + $0x118] sm:$0xff]
    %v127 = vld [vmem:[#allocation5 + $0x120] sm:$0xff]
    %v128 = vld [vmem:[#allocation5 + $0x128] sm:$0xff]
    %v129 = vld [vmem:[#allocation5 + $0x130] sm:$0xff]
    %v130 = vld [vmem:[#allocation5 + $0x138] sm:$0xff]
    %v131 = vld [vmem:[#allocation5 + $0x140] sm:$0xff]
    %v132 = vld [vmem:[#allocation5 + $0x148] sm:$0xff]
    %v133 = vld [vmem:[#allocation5 + $0x150] sm:$0xff]
    %v134 = vld [vmem:[#allocation5 + $0x158] sm:$0xff]
    %v135 = vld [vmem:[#allocation5 + $0x160] sm:$0xff]
    %v136 = vld [vmem:[#allocation5 + $0x168] sm:$0xff]
    %v137 = vld [vmem:[#allocation5 + $0x170] sm:$0xff]
    %v138 = vld [vmem:[#allocation5 + $0x178] sm:$0xff]
    %v139 = vld [vmem:[#allocation5 + $0x180] sm:$0xff]
    %v140 = vld [vmem:[#allocation5 + $0x188] sm:$0xff]
    %v141 = vld [vmem:[#allocation5 + $0x190] sm:$0xff]
    %v142 = vld [vmem:[#allocation5 + $0x198] sm:$0xff]
    %v143 = vld [vmem:[#allocation5 + $0x1a0] sm:$0xff]
    %v144 = vld [vmem:[#allocation5 + $0x1a8] sm:$0xff]
    %v145 = vld [vmem:[#allocation5 + $0x1b0] sm:$0xff]
    %v146 = vld [vmem:[#allocation5 + $0x1b8] sm:$0xff]
    %v147 = vld [vmem:[#allocation5 + $0x1c0] sm:$0xff]
    %v148 = vld [vmem:[#allocation5 + $0x1c8] sm:$0xff]
    %v149 = vld [vmem:[#allocation5 + $0x1d0] sm:$0xff]
    %v150 = vld [vmem:[#allocation5 + $0x1d8] sm:$0xff]
    %v151 = vld [vmem:[#allocation5 + $0x1e0] sm:$0xff]
    %v152 = vld [vmem:[#allocation5 + $0x1e8] sm:$0xff]
    %v153 = vld [vmem:[#allocation5 + $0x1f0] sm:$0xff]
    %v154 = vld [vmem:[#allocation5 + $0x1f8] sm:$0xff]
    %v155 = vld [vmem:[#allocation5 + $0x200] sm:$0xff]
    %v156 = vld [vmem:[#allocation5 + $0x208] sm:$0xff]
    %v157 = vld [vmem:[#allocation5 + $0x210] sm:$0xff]
    %v158 = vld [vmem:[#allocation5 + $0x218] sm:$0xff]
    %v159 = vld [vmem:[#allocation5 + $0x220] sm:$0xff]
    %v160 = vld [vmem:[#allocation5 + $0x228] sm:$0xff]
    %v161 = vld [vmem:[#allocation5 + $0x230] sm:$0xff]
    %v162 = vld [vmem:[#allocation5 + $0x238] sm:$0xff]
    %v163 = vld [vmem:[#allocation5 + $0x240] sm:$0xff]
    %v164 = vld [vmem:[#allocation5 + $0x248] sm:$0xff]
    %v165 = vld [vmem:[#allocation5 + $0x250] sm:$0xff]
    %v166 = vld [vmem:[#allocation5 + $0x258] sm:$0xff]
    %v167 = vld [vmem:[#allocation5 + $0x260] sm:$0xff]
    %v168 = vld [vmem:[#allocation5 + $0x268] sm:$0xff]
    %v169 = vld [vmem:[#allocation5 + $0x270] sm:$0xff]
    %v170 = vld [vmem:[#allocation5 + $0x278] sm:$0xff]
    %v171 = vld [vmem:[#allocation5 + $0x280] sm:$0xff]
    %v172 = vld [vmem:[#allocation5 + $0x288] sm:$0xff]
    %v173 = vld [vmem:[#allocation5 + $0x290] sm:$0xff]
    %v174 = vld [vmem:[#allocation5 + $0x298] sm:$0xff]
    %v175 = vld [vmem:[#allocation5 + $0x2a0] sm:$0xff]
    %v176 = vld [vmem:[#allocation5 + $0x2a8] sm:$0xff]
    %v177 = vld [vmem:[#allocation5 + $0x2b0] sm:$0xff]
    %v178 = vld [vmem:[#allocation5 + $0x2b8] sm:$0xff]
    %v179 = vld [vmem:[#allocation5 + $0x2c0] sm:$0xff]
    %v180 = vld [vmem:[#allocation5 + $0x2c8] sm:$0xff]
    %v181 = vld [vmem:[#allocation5 + $0x2d0] sm:$0xff]
    %v182 = vld [vmem:[#allocation5 + $0x2d8] sm:$0xff]
    %v183 = vld [vmem:[#allocation5 + $0x2e0] sm:$0xff]
    %v184 = vld [vmem:[#allocation5 + $0x2e8] sm:$0xff]
    %v185 = vld [vmem:[#allocation5 + $0x2f0] sm:$0xff]
    %v186 = vld [vmem:[#allocation5 + $0x2f8] sm:$0xff]
    %v187 = vld [vmem:[#allocation5 + $0x300] sm:$0xff]
    %v188 = vld [vmem:[#allocation5 + $0x308] sm:$0xff]
    %v189 = vld [vmem:[#allocation5 + $0x310] sm:$0xff]
    %v190 = vld [vmem:[#allocation5 + $0x318] sm:$0xff]
    %v191 = vld [vmem:[#allocation5 + $0x320] sm:$0xff]
    %v192 = vld [vmem:[#allocation5 + $0x328] sm:$0xff]
    %v193 = vld [vmem:[#allocation5 + $0x330] sm:$0xff]
    %v194 = vld [vmem:[#allocation5 + $0x338] sm:$0xff]
    %v195 = vld [vmem:[#allocation5 + $0x340] sm:$0xff]
    %v196 = vld [vmem:[#allocation5 + $0x348] sm:$0xff]
    %v197 = vld [vmem:[#allocation5 + $0x350] sm:$0xff]
    %v198 = vld [vmem:[#allocation5 + $0x358] sm:$0xff]
    %v199 = vld [vmem:[#allocation5 + $0x360] sm:$0xff]
    %v200 = vld [vmem:[#allocation5 + $0x368] sm:$0xff]
    %v201 = vld [vmem:[#allocation5 + $0x370] sm:$0xff]
    %v202 = vld [vmem:[#allocation5 + $0x378] sm:$0xff]
    %v203 = vld [vmem:[#allocation5 + $0x380] sm:$0xff]
    %v204 = vld [vmem:[#allocation5 + $0x388] sm:$0xff]
    %v205 = vld [vmem:[#allocation5 + $0x390] sm:$0xff]
    %v206 = vld [vmem:[#allocation5 + $0x398] sm:$0xff]
    %v207 = vld [vmem:[#allocation5 + $0x3a0] sm:$0xff]
    %v208 = vld [vmem:[#allocation5 + $0x3a8] sm:$0xff]
    %v209 = vld [vmem:[#allocation5 + $0x3b0] sm:$0xff]
    %v210 = vld [vmem:[#allocation5 + $0x3b8] sm:$0xff]
    %v211 = vld [vmem:[#allocation5 + $0x3c0] sm:$0xff]
    %v212 = vld [vmem:[#allocation5 + $0x3c8] sm:$0xff]
    %v213 = vld [vmem:[#allocation5 + $0x3d0] sm:$0xff]
    %v214 = vld [vmem:[#allocation5 + $0x3d8] sm:$0xff]
    %v215 = vld [vmem:[#allocation5 + $0x3e0] sm:$0xff]
    %v216 = vld [vmem:[#allocation5 + $0x3e8] sm:$0xff]
    %v217 = vld [vmem:[#allocation5 + $0x3f0] sm:$0xff]
    %v218 = vld [vmem:[#allocation5 + $0x3f8] sm:$0xff]
    %v219 = vld [vmem:[#allocation5 + $0x400] sm:$0xff]
    %v220 = vld [vmem:[#allocation5 + $0x408] sm:$0xff]
    %v221 = vld [vmem:[#allocation5 + $0x410] sm:$0xff]
    %v222 = vld [vmem:[#allocation5 + $0x418] sm:$0xff]
    %v223 = vld [vmem:[#allocation5 + $0x420] sm:$0xff]
    %v224 = vld [vmem:[#allocation5 + $0x428] sm:$0xff]
    %v225 = vld [vmem:[#allocation5 + $0x430] sm:$0xff]
    %v226 = vld [vmem:[#allocation5 + $0x438] sm:$0xff]
    %v227 = vld [vmem:[#allocation5 + $0x440] sm:$0xff]
    %v228 = vld [vmem:[#allocation5 + $0x448] sm:$0xff]
    %v229 = vld [vmem:[#allocation5 + $0x450] sm:$0xff]
    %v230 = vld [vmem:[#allocation5 + $0x458] sm:$0xff]
    %v231 = vld [vmem:[#allocation5 + $0x460] sm:$0xff]
    %v232 = vld [vmem:[#allocation5 + $0x468] sm:$0xff]
    %v233 = vld [vmem:[#allocation5 + $0x470] sm:$0xff]
    %v234 = vld [vmem:[#allocation5 + $0x478] sm:$0xff]
    %v235 = vld [vmem:[#allocation5 + $0x480] sm:$0xff]
    %v236 = vld [vmem:[#allocation5 + $0x488] sm:$0xff]
    %v237 = vld [vmem:[#allocation5 + $0x490] sm:$0xff]
    %v238 = vld [vmem:[#allocation5 + $0x498] sm:$0xff]
    %v239 = vld [vmem:[#allocation5 + $0x4a0] sm:$0xff]
    %v240 = vld [vmem:[#allocation5 + $0x4a8] sm:$0xff]
    %v241 = vld [vmem:[#allocation5 + $0x4b0] sm:$0xff]
    %v242 = vld [vmem:[#allocation5 + $0x4b8] sm:$0xff]
    %v243 = vld [vmem:[#allocation5 + $0x4c0] sm:$0xff]
    %v244 = vld [vmem:[#allocation5 + $0x4c8] sm:$0xff]
    %v245 = vld [vmem:[#allocation5 + $0x4d0] sm:$0xff]
    %v246 = vld [vmem:[#allocation5 + $0x4d8] sm:$0xff]
    %v247 = vld [vmem:[#allocation5 + $0x4e0] sm:$0xff]
    %v248 = vld [vmem:[#allocation5 + $0x4e8] sm:$0xff]
    %v249 = vld [vmem:[#allocation5 + $0x4f0] sm:$0xff]
    %v250 = vld [vmem:[#allocation5 + $0x4f8] sm:$0xff]
    %v251 = vld [vmem:[#allocation5 + $0x500] sm:$0xff]
    %v252 = vld [vmem:[#allocation5 + $0x508] sm:$0xff]
    %v253 = vld [vmem:[#allocation5 + $0x510] sm:$0xff]
    %v254 = vld [vmem:[#allocation5 + $0x518] sm:$0xff]
    %v255 = vld [vmem:[#allocation5 + $0x520] sm:$0xff]
    %v256 = vld [vmem:[#allocation5 + $0x528] sm:$0xff]
    %v257 = vld [vmem:[#allocation5 + $0x530] sm:$0xff]
    %v258 = vld [vmem:[#allocation5 + $0x538] sm:$0xff]
    %v259 = vld [vmem:[#allocation5 + $0x540] sm:$0xff]
    %v260 = vld [vmem:[#allocation5 + $0x548] sm:$0xff]
    %v261 = vld [vmem:[#allocation5 + $0x550] sm:$0xff]
    %v262 = vld [vmem:[#allocation5 + $0x558] sm:$0xff]
    %v263 = vld [vmem:[#allocation5 + $0x560] sm:$0xff]
    %v264 = vld [vmem:[#allocation5 + $0x568] sm:$0xff]
    %v265 = vld [vmem:[#allocation5 + $0x570] sm:$0xff]
    %v266 = vld [vmem:[#allocation5 + $0x578] sm:$0xff]
    %v267 = vld [vmem:[#allocation5 + $0x580] sm:$0xff]
    %v268 = vld [vmem:[#allocation5 + $0x588] sm:$0xff]
    %v269 = vld [vmem:[#allocation5 + $0x590] sm:$0xff]
    %v270 = vld [vmem:[#allocation5 + $0x598] sm:$0xff]
    %v271 = vld [vmem:[#allocation5 + $0x5a0] sm:$0xff]
    %v272 = vld [vmem:[#allocation5 + $0x5a8] sm:$0xff]
    %v273 = vld [vmem:[#allocation5 + $0x5b0] sm:$0xff]
    %v274 = vld [vmem:[#allocation5 + $0x5b8] sm:$0xff]
    %v275 = vld [vmem:[#allocation5 + $0x5c0] sm:$0xff]
    %v276 = vld [vmem:[#allocation5 + $0x5c8] sm:$0xff]
    %v277 = vld [vmem:[#allocation5 + $0x5d0] sm:$0xff]
    %v278 = vld [vmem:[#allocation5 + $0x5d8] sm:$0xff]
    %v279 = vld [vmem:[#allocation5 + $0x5e0] sm:$0xff]
    %v280 = vld [vmem:[#allocation5 + $0x5e8] sm:$0xff]
    %v281 = vld [vmem:[#allocation5 + $0x5f0] sm:$0xff]
    %v282 = vld [vmem:[#allocation5 + $0x5f8] sm:$0xff]
    %v283 = vld [vmem:[%s2] sm:$0xf]
    %v285 = vlaneseq
    %v286 = vshrl.u32 %v285, 7
    %v287 = vsub.s32 0, %v286
    %v288 = vrot.slane %v283, %v287
    %v289 = vlaneseq
    %v290 = vshrl.u32 %v289, 7
    %v291 = vsub.s32 1, %v290
    %v292 = vrot.slane %v283, %v291
    %v293 = vlaneseq
    %v294 = vshrl.u32 %v293, 7
    %v295 = vsub.s32 2, %v294
    %v296 = vrot.slane %v283, %v295
    %v297 = vlaneseq
    %v298 = vshrl.u32 %v297, 7
    %v299 = vsub.s32 3, %v298
    %v300 = vrot.slane %v283, %v299
    %v313 = vcombine.low %v83, %v84
    %v314 = vcombine.high %v83, %v84
    %v315 = vcombine.low %v85, %v86
    %v316 = vcombine.high %v85, %v86
    %v317 = vcombine.low %v87, %v88
    %v318 = vcombine.high %v87, %v88
    %v319 = vcombine.low %v89, %v90
    %v320 = vcombine.high %v89, %v90
    %v322 = vunpack.c.l.s4 1966171168
    %v323 = vunpack.c.0.s8 %v322
    %v324 = vlaneseq
    %v325 = vshrl.u32 %v324, 7
    %v326 = vsub.s32 %v323, %v325
    %v327 = vrot.slane %v313, %v326
    %v329 = vunpack.c.l.s4 1966171168
    %v330 = vunpack.c.0.s8 %v329
    %v331 = vlaneseq
    %v332 = vshrl.u32 %v331, 7
    %v333 = vsub.s32 %v330, %v332
    %v334 = vrot.slane %v314, %v333
    %v336 = vunpack.c.l.s4 1966171168
    %v337 = vunpack.c.0.s8 %v336
    %v338 = vlaneseq
    %v339 = vshrl.u32 %v338, 7
    %v340 = vsub.s32 %v337, %v339
    %v341 = vrot.slane %v315, %v340
    %v343 = vunpack.c.l.s4 1966171168
    %v344 = vunpack.c.0.s8 %v343
    %v345 = vlaneseq
    %v346 = vshrl.u32 %v345, 7
    %v347 = vsub.s32 %v344, %v346
    %v348 = vrot.slane %v316, %v347
    %v350 = vunpack.c.l.s4 1966171168
    %v351 = vunpack.c.0.s8 %v350
    %v352 = vlaneseq
    %v353 = vshrl.u32 %v352, 7
    %v354 = vsub.s32 %v351, %v353
    %v355 = vrot.slane %v317, %v354
    %v357 = vunpack.c.l.s4 1966171168
    %v358 = vunpack.c.0.s8 %v357
    %v359 = vlaneseq
    %v360 = vshrl.u32 %v359, 7
    %v361 = vsub.s32 %v358, %v360
    %v362 = vrot.slane %v318, %v361
    %v364 = vunpack.c.l.s4 1966171168
    %v365 = vunpack.c.0.s8 %v364
    %v366 = vlaneseq
    %v367 = vshrl.u32 %v366, 7
    %v368 = vsub.s32 %v365, %v367
    %v369 = vrot.slane %v319, %v368
    %v371 = vunpack.c.l.s4 1966171168
    %v372 = vunpack.c.0.s8 %v371
    %v373 = vlaneseq
    %v374 = vshrl.u32 %v373, 7
    %v375 = vsub.s32 %v372, %v374
    %v376 = vrot.slane %v320, %v375
    %v377 = vcombine.low %v327, %v341
    %v378 = vcombine.high %v327, %v341
    %v379 = vcombine.low %v334, %v348
    %v380 = vcombine.high %v334, %v348
    %v381 = vcombine.low %v355, %v369
    %v382 = vcombine.high %v355, %v369
    %v383 = vcombine.low %v362, %v376
    %v384 = vcombine.high %v362, %v376
    %v386 = vunpack.c.l.s4 1966171168
    %v387 = vunpack.c.0.s8 %v386
    %v388 = vlaneseq
    %v389 = vshrl.u32 %v388, 7
    %v390 = vsub.s32 %v387, %v389
    %v391 = vrot.slane %v377, %v390
    %v393 = vunpack.c.l.s4 1966171168
    %v394 = vunpack.c.0.s8 %v393
    %v395 = vlaneseq
    %v396 = vshrl.u32 %v395, 7
    %v397 = vsub.s32 %v394, %v396
    %v398 = vrot.slane %v379, %v397
    %v400 = vunpack.c.l.s4 1966171168
    %v401 = vunpack.c.0.s8 %v400
    %v402 = vlaneseq
    %v403 = vshrl.u32 %v402, 7
    %v404 = vsub.s32 %v401, %v403
    %v405 = vrot.slane %v378, %v404
    %v407 = vunpack.c.l.s4 1966171168
    %v408 = vunpack.c.0.s8 %v407
    %v409 = vlaneseq
    %v410 = vshrl.u32 %v409, 7
    %v411 = vsub.s32 %v408, %v410
    %v412 = vrot.slane %v380, %v411
    %v414 = vunpack.c.l.s4 1966171168
    %v415 = vunpack.c.0.s8 %v414
    %v416 = vlaneseq
    %v417 = vshrl.u32 %v416, 7
    %v418 = vsub.s32 %v415, %v417
    %v419 = vrot.slane %v381, %v418
    %v421 = vunpack.c.l.s4 1966171168
    %v422 = vunpack.c.0.s8 %v421
    %v423 = vlaneseq
    %v424 = vshrl.u32 %v423, 7
    %v425 = vsub.s32 %v422, %v424
    %v426 = vrot.slane %v383, %v425
    %v428 = vunpack.c.l.s4 1966171168
    %v429 = vunpack.c.0.s8 %v428
    %v430 = vlaneseq
    %v431 = vshrl.u32 %v430, 7
    %v432 = vsub.s32 %v429, %v431
    %v433 = vrot.slane %v382, %v432
    %v435 = vunpack.c.l.s4 1966171168
    %v436 = vunpack.c.0.s8 %v435
    %v437 = vlaneseq
    %v438 = vshrl.u32 %v437, 7
    %v439 = vsub.s32 %v436, %v438
    %v440 = vrot.slane %v384, %v439
    %v441 = vcombine.low %v391, %v419
    %v442 = vcombine.high %v391, %v419
    %v443 = vcombine.low %v398, %v426
    %v444 = vcombine.low %v405, %v433
    %v445 = vcombine.high %v405, %v433
    %v446 = vcombine.low %v412, %v440
    %v645 = vunpack.c.l.b16 %v91
    %v646 = vunpack.c.h.b16 %v91
    %v647 = vunpack.c.l.b16 %v92
    %v648 = vunpack.c.h.b16 %v92
    %v649 = vunpack.c.l.b16 %v93
    %v650 = vunpack.c.h.b16 %v93
    %v651 = vunpack.c.l.b16 %v94
    %v652 = vunpack.c.h.b16 %v94
    %v653 = vunpack.c.l.b16 %v95
    %v654 = vunpack.c.h.b16 %v95
    %v655 = vunpack.c.l.b16 %v96
    %v656 = vunpack.c.h.b16 %v96
    %v657 = vunpack.c.l.b16 %v97
    %v658 = vunpack.c.h.b16 %v97
    %v659 = vunpack.c.l.b16 %v98
    %v660 = vunpack.c.h.b16 %v98
    %v661 = vunpack.c.l.b16 %v99
    %v662 = vunpack.c.h.b16 %v99
    %v663 = vunpack.c.l.b16 %v100
    %v664 = vunpack.c.h.b16 %v100
    %v665 = vunpack.c.l.b16 %v101
    %v666 = vunpack.c.h.b16 %v101
    %v667 = vunpack.c.l.b16 %v102
    %v668 = vunpack.c.h.b16 %v102
    %v669 = vunpack.c.l.b16 %v103
    %v670 = vunpack.c.h.b16 %v103
    %v671 = vunpack.c.l.b16 %v104
    %v672 = vunpack.c.h.b16 %v104
    %v673 = vunpack.c.l.b16 %v105
    %v674 = vunpack.c.h.b16 %v105
    %v675 = vunpack.c.l.b16 %v106
    %v676 = vunpack.c.h.b16 %v106
    %v677 = vunpack.c.l.b16 %v107
    %v678 = vunpack.c.h.b16 %v107
    %v679 = vunpack.c.l.b16 %v108
    %v680 = vunpack.c.h.b16 %v108
    %v681 = vunpack.c.l.b16 %v109
    %v682 = vunpack.c.h.b16 %v109
    %v683 = vunpack.c.l.b16 %v110
    %v684 = vunpack.c.h.b16 %v110
    %v685 = vunpack.c.l.b16 %v111
    %v686 = vunpack.c.h.b16 %v111
    %v687 = vunpack.c.l.b16 %v112
    %v688 = vunpack.c.h.b16 %v112
    %v689 = vunpack.c.l.b16 %v113
    %v690 = vunpack.c.h.b16 %v113
    %v691 = vunpack.c.l.b16 %v114
    %v692 = vunpack.c.h.b16 %v114
    %v693 = vunpack.c.l.b16 %v115
    %v694 = vunpack.c.h.b16 %v115
    %v695 = vunpack.c.l.b16 %v116
    %v696 = vunpack.c.h.b16 %v116
    %v697 = vunpack.c.l.b16 %v117
    %v698 = vunpack.c.h.b16 %v117
    %v699 = vunpack.c.l.b16 %v118
    %v700 = vunpack.c.h.b16 %v118
    %v701 = vunpack.c.l.b16 %v119
    %v702 = vunpack.c.h.b16 %v119
    %v703 = vunpack.c.l.b16 %v120
    %v704 = vunpack.c.h.b16 %v120
    %v705 = vunpack.c.l.b16 %v121
    %v706 = vunpack.c.h.b16 %v121
    %v707 = vunpack.c.l.b16 %v122
    %v708 = vunpack.c.h.b16 %v122
    %v709 = vunpack.c.l.b16 %v123
    %v710 = vunpack.c.h.b16 %v123
    %v711 = vunpack.c.l.b16 %v124
    %v712 = vunpack.c.h.b16 %v124
    %v713 = vunpack.c.l.b16 %v125
    %v714 = vunpack.c.h.b16 %v125
    %v715 = vunpack.c.l.b16 %v126
    %v716 = vunpack.c.h.b16 %v126
    %v717 = vunpack.c.l.b16 %v127
    %v718 = vunpack.c.h.b16 %v127
    %v719 = vunpack.c.l.b16 %v128
    %v720 = vunpack.c.h.b16 %v128
    %v721 = vunpack.c.l.b16 %v129
    %v722 = vunpack.c.h.b16 %v129
    %v723 = vunpack.c.l.b16 %v130
    %v724 = vunpack.c.h.b16 %v130
    %v725 = vunpack.c.l.b16 %v131
    %v726 = vunpack.c.h.b16 %v131
    %v727 = vunpack.c.l.b16 %v132
    %v728 = vunpack.c.h.b16 %v132
    %v729 = vunpack.c.l.b16 %v133
    %v730 = vunpack.c.h.b16 %v133
    %v731 = vunpack.c.l.b16 %v134
    %v732 = vunpack.c.h.b16 %v134
    %v733 = vunpack.c.l.b16 %v135
    %v734 = vunpack.c.h.b16 %v135
    %v735 = vunpack.c.l.b16 %v136
    %v736 = vunpack.c.h.b16 %v136
    %v737 = vunpack.c.l.b16 %v137
    %v738 = vunpack.c.h.b16 %v137
    %v739 = vunpack.c.l.b16 %v138
    %v740 = vunpack.c.h.b16 %v138
    %v741 = vunpack.c.l.b16 %v139
    %v742 = vunpack.c.h.b16 %v139
    %v743 = vunpack.c.l.b16 %v140
    %v744 = vunpack.c.h.b16 %v140
    %v745 = vunpack.c.l.b16 %v141
    %v746 = vunpack.c.h.b16 %v141
    %v747 = vunpack.c.l.b16 %v142
    %v748 = vunpack.c.h.b16 %v142
    %v749 = vunpack.c.l.b16 %v143
    %v750 = vunpack.c.h.b16 %v143
    %v751 = vunpack.c.l.b16 %v144
    %v752 = vunpack.c.h.b16 %v144
    %v753 = vunpack.c.l.b16 %v145
    %v754 = vunpack.c.h.b16 %v145
    %v755 = vunpack.c.l.b16 %v146
    %v756 = vunpack.c.h.b16 %v146
    %v757 = vunpack.c.l.b16 %v147
    %v758 = vunpack.c.h.b16 %v147
    %v759 = vunpack.c.l.b16 %v148
    %v760 = vunpack.c.h.b16 %v148
    %v761 = vunpack.c.l.b16 %v149
    %v762 = vunpack.c.h.b16 %v149
    %v763 = vunpack.c.l.b16 %v150
    %v764 = vunpack.c.h.b16 %v150
    %v765 = vunpack.c.l.b16 %v151
    %v766 = vunpack.c.h.b16 %v151
    %v767 = vunpack.c.l.b16 %v152
    %v768 = vunpack.c.h.b16 %v152
    %v769 = vunpack.c.l.b16 %v153
    %v770 = vunpack.c.h.b16 %v153
    %v771 = vunpack.c.l.b16 %v154
    %v772 = vunpack.c.h.b16 %v154
    %v773 = vunpack.c.l.b16 %v155
    %v774 = vunpack.c.h.b16 %v155
    %v775 = vunpack.c.l.b16 %v156
    %v776 = vunpack.c.h.b16 %v156
    %v777 = vunpack.c.l.b16 %v157
    %v778 = vunpack.c.h.b16 %v157
    %v779 = vunpack.c.l.b16 %v158
    %v780 = vunpack.c.h.b16 %v158
    %v781 = vunpack.c.l.b16 %v159
    %v782 = vunpack.c.h.b16 %v159
    %v783 = vunpack.c.l.b16 %v160
    %v784 = vunpack.c.h.b16 %v160
    %v785 = vunpack.c.l.b16 %v161
    %v786 = vunpack.c.h.b16 %v161
    %v787 = vunpack.c.l.b16 %v162
    %v788 = vunpack.c.h.b16 %v162
    %v789 = vunpack.c.l.b16 %v163
    %v790 = vunpack.c.h.b16 %v163
    %v791 = vunpack.c.l.b16 %v164
    %v792 = vunpack.c.h.b16 %v164
    %v793 = vunpack.c.l.b16 %v165
    %v794 = vunpack.c.h.b16 %v165
    %v795 = vunpack.c.l.b16 %v166
    %v796 = vunpack.c.h.b16 %v166
    %v797 = vunpack.c.l.b16 %v167
    %v798 = vunpack.c.h.b16 %v167
    %v799 = vunpack.c.l.b16 %v168
    %v800 = vunpack.c.h.b16 %v168
    %v801 = vunpack.c.l.b16 %v169
    %v802 = vunpack.c.h.b16 %v169
    %v803 = vunpack.c.l.b16 %v170
    %v804 = vunpack.c.h.b16 %v170
    %v805 = vunpack.c.l.b16 %v171
    %v806 = vunpack.c.h.b16 %v171
    %v807 = vunpack.c.l.b16 %v172
    %v808 = vunpack.c.h.b16 %v172
    %v809 = vunpack.c.l.b16 %v173
    %v810 = vunpack.c.h.b16 %v173
    %v811 = vunpack.c.l.b16 %v174
    %v812 = vunpack.c.h.b16 %v174
    %v813 = vunpack.c.l.b16 %v175
    %v814 = vunpack.c.h.b16 %v175
    %v815 = vunpack.c.l.b16 %v176
    %v816 = vunpack.c.h.b16 %v176
    %v817 = vunpack.c.l.b16 %v177
    %v818 = vunpack.c.h.b16 %v177
    %v819 = vunpack.c.l.b16 %v178
    %v820 = vunpack.c.h.b16 %v178
    %v821 = vunpack.c.l.b16 %v179
    %v822 = vunpack.c.h.b16 %v179
    %v823 = vunpack.c.l.b16 %v180
    %v824 = vunpack.c.h.b16 %v180
    %v825 = vunpack.c.l.b16 %v181
    %v826 = vunpack.c.h.b16 %v181
    %v827 = vunpack.c.l.b16 %v182
    %v828 = vunpack.c.h.b16 %v182
    %v829 = vunpack.c.l.b16 %v183
    %v830 = vunpack.c.h.b16 %v183
    %v831 = vunpack.c.l.b16 %v184
    %v832 = vunpack.c.h.b16 %v184
    %v833 = vunpack.c.l.b16 %v185
    %v834 = vunpack.c.h.b16 %v185
    %v835 = vunpack.c.l.b16 %v186
    %v836 = vunpack.c.h.b16 %v186
    %v837 = vunpack.c.l.b16 %v187
    %v838 = vunpack.c.h.b16 %v187
    %v839 = vunpack.c.l.b16 %v188
    %v840 = vunpack.c.h.b16 %v188
    %v841 = vunpack.c.l.b16 %v189
    %v842 = vunpack.c.h.b16 %v189
    %v843 = vunpack.c.l.b16 %v190
    %v844 = vunpack.c.h.b16 %v190
    %v845 = vunpack.c.l.b16 %v191
    %v846 = vunpack.c.h.b16 %v191
    %v847 = vunpack.c.l.b16 %v192
    %v848 = vunpack.c.h.b16 %v192
    %v849 = vunpack.c.l.b16 %v193
    %v850 = vunpack.c.h.b16 %v193
    %v851 = vunpack.c.l.b16 %v194
    %v852 = vunpack.c.h.b16 %v194
    %v853 = vunpack.c.l.b16 %v195
    %v854 = vunpack.c.h.b16 %v195
    %v855 = vunpack.c.l.b16 %v196
    %v856 = vunpack.c.h.b16 %v196
    %v857 = vunpack.c.l.b16 %v197
    %v858 = vunpack.c.h.b16 %v197
    %v859 = vunpack.c.l.b16 %v198
    %v860 = vunpack.c.h.b16 %v198
    %v861 = vunpack.c.l.b16 %v199
    %v862 = vunpack.c.h.b16 %v199
    %v863 = vunpack.c.l.b16 %v200
    %v864 = vunpack.c.h.b16 %v200
    %v865 = vunpack.c.l.b16 %v201
    %v866 = vunpack.c.h.b16 %v201
    %v867 = vunpack.c.l.b16 %v202
    %v868 = vunpack.c.h.b16 %v202
    %v869 = vunpack.c.l.b16 %v203
    %v870 = vunpack.c.h.b16 %v203
    %v871 = vunpack.c.l.b16 %v204
    %v872 = vunpack.c.h.b16 %v204
    %v873 = vunpack.c.l.b16 %v205
    %v874 = vunpack.c.h.b16 %v205
    %v875 = vunpack.c.l.b16 %v206
    %v876 = vunpack.c.h.b16 %v206
    %v877 = vunpack.c.l.b16 %v207
    %v878 = vunpack.c.h.b16 %v207
    %v879 = vunpack.c.l.b16 %v208
    %v880 = vunpack.c.h.b16 %v208
    %v881 = vunpack.c.l.b16 %v209
    %v882 = vunpack.c.h.b16 %v209
    %v883 = vunpack.c.l.b16 %v210
    %v884 = vunpack.c.h.b16 %v210
    %v885 = vunpack.c.l.b16 %v211
    %v886 = vunpack.c.h.b16 %v211
    %v887 = vunpack.c.l.b16 %v212
    %v888 = vunpack.c.h.b16 %v212
    %v889 = vunpack.c.l.b16 %v213
    %v890 = vunpack.c.h.b16 %v213
    %v891 = vunpack.c.l.b16 %v214
    %v892 = vunpack.c.h.b16 %v214
    %v893 = vunpack.c.l.b16 %v215
    %v894 = vunpack.c.h.b16 %v215
    %v895 = vunpack.c.l.b16 %v216
    %v896 = vunpack.c.h.b16 %v216
    %v897 = vunpack.c.l.b16 %v217
    %v898 = vunpack.c.h.b16 %v217
    %v899 = vunpack.c.l.b16 %v218
    %v900 = vunpack.c.h.b16 %v218
    %v901 = vunpack.c.l.b16 %v219
    %v902 = vunpack.c.h.b16 %v219
    %v903 = vunpack.c.l.b16 %v220
    %v904 = vunpack.c.h.b16 %v220
    %v905 = vunpack.c.l.b16 %v221
    %v906 = vunpack.c.h.b16 %v221
    %v907 = vunpack.c.l.b16 %v222
    %v908 = vunpack.c.h.b16 %v222
    %v909 = vunpack.c.l.b16 %v223
    %v910 = vunpack.c.h.b16 %v223
    %v911 = vunpack.c.l.b16 %v224
    %v912 = vunpack.c.h.b16 %v224
    %v913 = vunpack.c.l.b16 %v225
    %v914 = vunpack.c.h.b16 %v225
    %v915 = vunpack.c.l.b16 %v226
    %v916 = vunpack.c.h.b16 %v226
    %v917 = vunpack.c.l.b16 %v227
    %v918 = vunpack.c.h.b16 %v227
    %v919 = vunpack.c.l.b16 %v228
    %v920 = vunpack.c.h.b16 %v228
    %v921 = vunpack.c.l.b16 %v229
    %v922 = vunpack.c.h.b16 %v229
    %v923 = vunpack.c.l.b16 %v230
    %v924 = vunpack.c.h.b16 %v230
    %v925 = vunpack.c.l.b16 %v231
    %v926 = vunpack.c.h.b16 %v231
    %v927 = vunpack.c.l.b16 %v232
    %v928 = vunpack.c.h.b16 %v232
    %v929 = vunpack.c.l.b16 %v233
    %v930 = vunpack.c.h.b16 %v233
    %v931 = vunpack.c.l.b16 %v234
    %v932 = vunpack.c.h.b16 %v234
    %v933 = vunpack.c.l.b16 %v235
    %v934 = vunpack.c.h.b16 %v235
    %v935 = vunpack.c.l.b16 %v236
    %v936 = vunpack.c.h.b16 %v236
    %v937 = vunpack.c.l.b16 %v237
    %v938 = vunpack.c.h.b16 %v237
    %v939 = vunpack.c.l.b16 %v238
    %v940 = vunpack.c.h.b16 %v238
    %v941 = vunpack.c.l.b16 %v239
    %v942 = vunpack.c.h.b16 %v239
    %v943 = vunpack.c.l.b16 %v240
    %v944 = vunpack.c.h.b16 %v240
    %v945 = vunpack.c.l.b16 %v241
    %v946 = vunpack.c.h.b16 %v241
    %v947 = vunpack.c.l.b16 %v242
    %v948 = vunpack.c.h.b16 %v242
    %v949 = vunpack.c.l.b16 %v243
    %v950 = vunpack.c.h.b16 %v243
    %v951 = vunpack.c.l.b16 %v244
    %v952 = vunpack.c.h.b16 %v244
    %v953 = vunpack.c.l.b16 %v245
    %v954 = vunpack.c.h.b16 %v245
    %v955 = vunpack.c.l.b16 %v246
    %v956 = vunpack.c.h.b16 %v246
    %v957 = vunpack.c.l.b16 %v247
    %v958 = vunpack.c.h.b16 %v247
    %v959 = vunpack.c.l.b16 %v248
    %v960 = vunpack.c.h.b16 %v248
    %v961 = vunpack.c.l.b16 %v249
    %v962 = vunpack.c.h.b16 %v249
    %v963 = vunpack.c.l.b16 %v250
    %v964 = vunpack.c.h.b16 %v250
    %v965 = vunpack.c.l.b16 %v251
    %v966 = vunpack.c.h.b16 %v251
    %v967 = vunpack.c.l.b16 %v252
    %v968 = vunpack.c.h.b16 %v252
    %v969 = vunpack.c.l.b16 %v253
    %v970 = vunpack.c.h.b16 %v253
    %v971 = vunpack.c.l.b16 %v254
    %v972 = vunpack.c.h.b16 %v254
    %v973 = vunpack.c.l.b16 %v255
    %v974 = vunpack.c.h.b16 %v255
    %v975 = vunpack.c.l.b16 %v256
    %v976 = vunpack.c.h.b16 %v256
    %v977 = vunpack.c.l.b16 %v257
    %v978 = vunpack.c.h.b16 %v257
    %v979 = vunpack.c.l.b16 %v258
    %v980 = vunpack.c.h.b16 %v258
    %v981 = vunpack.c.l.b16 %v259
    %v982 = vunpack.c.h.b16 %v259
    %v983 = vunpack.c.l.b16 %v260
    %v984 = vunpack.c.h.b16 %v260
    %v985 = vunpack.c.l.b16 %v261
    %v986 = vunpack.c.h.b16 %v261
    %v987 = vunpack.c.l.b16 %v262
    %v988 = vunpack.c.h.b16 %v262
    %v989 = vunpack.c.l.b16 %v263
    %v990 = vunpack.c.h.b16 %v263
    %v991 = vunpack.c.l.b16 %v264
    %v992 = vunpack.c.h.b16 %v264
    %v993 = vunpack.c.l.b16 %v265
    %v994 = vunpack.c.h.b16 %v265
    %v995 = vunpack.c.l.b16 %v266
    %v996 = vunpack.c.h.b16 %v266
    %v997 = vunpack.c.l.b16 %v267
    %v998 = vunpack.c.h.b16 %v267
    %v999 = vunpack.c.l.b16 %v268
    %v1000 = vunpack.c.h.b16 %v268
    %v1001 = vunpack.c.l.b16 %v269
    %v1002 = vunpack.c.h.b16 %v269
    %v1003 = vunpack.c.l.b16 %v270
    %v1004 = vunpack.c.h.b16 %v270
    %v1005 = vunpack.c.l.b16 %v271
    %v1006 = vunpack.c.h.b16 %v271
    %v1007 = vunpack.c.l.b16 %v272
    %v1008 = vunpack.c.h.b16 %v272
    %v1009 = vunpack.c.l.b16 %v273
    %v1010 = vunpack.c.h.b16 %v273
    %v1011 = vunpack.c.l.b16 %v274
    %v1012 = vunpack.c.h.b16 %v274
    %v1013 = vunpack.c.l.b16 %v275
    %v1014 = vunpack.c.h.b16 %v275
    %v1015 = vunpack.c.l.b16 %v276
    %v1016 = vunpack.c.h.b16 %v276
    %v1017 = vunpack.c.l.b16 %v277
    %v1018 = vunpack.c.h.b16 %v277
    %v1019 = vunpack.c.l.b16 %v278
    %v1020 = vunpack.c.h.b16 %v278
    %v1021 = vunpack.c.l.b16 %v279
    %v1022 = vunpack.c.h.b16 %v279
    %v1023 = vunpack.c.l.b16 %v280
    %v1024 = vunpack.c.h.b16 %v280
    %v1025 = vunpack.c.l.b16 %v281
    %v1026 = vunpack.c.h.b16 %v281
    %v1027 = vunpack.c.l.b16 %v282
    %v1028 = vunpack.c.h.b16 %v282
    %v1029 = vpack.c.b16 %v649, %v645
    %v1030 = vpack.c.b16 %v650, %v646
    %v1031 = vpack.c.b16 %v651, %v647
    %v1032 = vpack.c.b16 %v652, %v648
    %v1033 = vpack.c.b16 %v657, %v653
    %v1034 = vpack.c.b16 %v658, %v654
    %v1035 = vpack.c.b16 %v659, %v655
    %v1036 = vpack.c.b16 %v660, %v656
    %v1037 = vpack.c.b16 %v665, %v661
    %v1038 = vpack.c.b16 %v666, %v662
    %v1039 = vpack.c.b16 %v667, %v663
    %v1040 = vpack.c.b16 %v668, %v664
    %v1041 = vpack.c.b16 %v673, %v669
    %v1042 = vpack.c.b16 %v674, %v670
    %v1043 = vpack.c.b16 %v675, %v671
    %v1044 = vpack.c.b16 %v676, %v672
    %v1045 = vpack.c.b16 %v681, %v677
    %v1046 = vpack.c.b16 %v682, %v678
    %v1047 = vpack.c.b16 %v683, %v679
    %v1048 = vpack.c.b16 %v684, %v680
    %v1049 = vpack.c.b16 %v689, %v685
    %v1050 = vpack.c.b16 %v690, %v686
    %v1051 = vpack.c.b16 %v691, %v687
    %v1052 = vpack.c.b16 %v692, %v688
    %v1053 = vpack.c.b16 %v697, %v693
    %v1054 = vpack.c.b16 %v698, %v694
    %v1055 = vpack.c.b16 %v699, %v695
    %v1056 = vpack.c.b16 %v700, %v696
    %v1057 = vpack.c.b16 %v705, %v701
    %v1058 = vpack.c.b16 %v706, %v702
    %v1059 = vpack.c.b16 %v707, %v703
    %v1060 = vpack.c.b16 %v708, %v704
    %v1061 = vpack.c.b16 %v713, %v709
    %v1062 = vpack.c.b16 %v714, %v710
    %v1063 = vpack.c.b16 %v715, %v711
    %v1064 = vpack.c.b16 %v716, %v712
    %v1065 = vpack.c.b16 %v721, %v717
    %v1066 = vpack.c.b16 %v722, %v718
    %v1067 = vpack.c.b16 %v723, %v719
    %v1068 = vpack.c.b16 %v724, %v720
    %v1069 = vpack.c.b16 %v729, %v725
    %v1070 = vpack.c.b16 %v730, %v726
    %v1071 = vpack.c.b16 %v731, %v727
    %v1072 = vpack.c.b16 %v732, %v728
    %v1073 = vpack.c.b16 %v737, %v733
    %v1074 = vpack.c.b16 %v738, %v734
    %v1075 = vpack.c.b16 %v739, %v735
    %v1076 = vpack.c.b16 %v740, %v736
    %v1077 = vpack.c.b16 %v745, %v741
    %v1078 = vpack.c.b16 %v746, %v742
    %v1079 = vpack.c.b16 %v747, %v743
    %v1080 = vpack.c.b16 %v748, %v744
    %v1081 = vpack.c.b16 %v753, %v749
    %v1082 = vpack.c.b16 %v754, %v750
    %v1083 = vpack.c.b16 %v755, %v751
    %v1084 = vpack.c.b16 %v756, %v752
    %v1085 = vpack.c.b16 %v761, %v757
    %v1086 = vpack.c.b16 %v762, %v758
    %v1087 = vpack.c.b16 %v763, %v759
    %v1088 = vpack.c.b16 %v764, %v760
    %v1089 = vpack.c.b16 %v769, %v765
    %v1090 = vpack.c.b16 %v770, %v766
    %v1091 = vpack.c.b16 %v771, %v767
    %v1092 = vpack.c.b16 %v772, %v768
    %v1093 = vpack.c.b16 %v777, %v773
    %v1094 = vpack.c.b16 %v778, %v774
    %v1095 = vpack.c.b16 %v779, %v775
    %v1096 = vpack.c.b16 %v780, %v776
    %v1097 = vpack.c.b16 %v785, %v781
    %v1098 = vpack.c.b16 %v786, %v782
    %v1099 = vpack.c.b16 %v787, %v783
    %v1100 = vpack.c.b16 %v788, %v784
    %v1101 = vpack.c.b16 %v793, %v789
    %v1102 = vpack.c.b16 %v794, %v790
    %v1103 = vpack.c.b16 %v795, %v791
    %v1104 = vpack.c.b16 %v796, %v792
    %v1105 = vpack.c.b16 %v801, %v797
    %v1106 = vpack.c.b16 %v802, %v798
    %v1107 = vpack.c.b16 %v803, %v799
    %v1108 = vpack.c.b16 %v804, %v800
    %v1109 = vpack.c.b16 %v809, %v805
    %v1110 = vpack.c.b16 %v810, %v806
    %v1111 = vpack.c.b16 %v811, %v807
    %v1112 = vpack.c.b16 %v812, %v808
    %v1113 = vpack.c.b16 %v817, %v813
    %v1114 = vpack.c.b16 %v818, %v814
    %v1115 = vpack.c.b16 %v819, %v815
    %v1116 = vpack.c.b16 %v820, %v816
    %v1117 = vpack.c.b16 %v825, %v821
    %v1118 = vpack.c.b16 %v826, %v822
    %v1119 = vpack.c.b16 %v827, %v823
    %v1120 = vpack.c.b16 %v828, %v824
    %v1121 = vpack.c.b16 %v833, %v829
    %v1122 = vpack.c.b16 %v834, %v830
    %v1123 = vpack.c.b16 %v835, %v831
    %v1124 = vpack.c.b16 %v836, %v832
    %v1125 = vpack.c.b16 %v841, %v837
    %v1126 = vpack.c.b16 %v842, %v838
    %v1127 = vpack.c.b16 %v843, %v839
    %v1128 = vpack.c.b16 %v844, %v840
    %v1129 = vpack.c.b16 %v849, %v845
    %v1130 = vpack.c.b16 %v850, %v846
    %v1131 = vpack.c.b16 %v851, %v847
    %v1132 = vpack.c.b16 %v852, %v848
    %v1133 = vpack.c.b16 %v857, %v853
    %v1134 = vpack.c.b16 %v858, %v854
    %v1135 = vpack.c.b16 %v859, %v855
    %v1136 = vpack.c.b16 %v860, %v856
    %v1137 = vpack.c.b16 %v865, %v861
    %v1138 = vpack.c.b16 %v866, %v862
    %v1139 = vpack.c.b16 %v867, %v863
    %v1140 = vpack.c.b16 %v868, %v864
    %v1141 = vpack.c.b16 %v873, %v869
    %v1142 = vpack.c.b16 %v874, %v870
    %v1143 = vpack.c.b16 %v875, %v871
    %v1144 = vpack.c.b16 %v876, %v872
    %v1145 = vpack.c.b16 %v881, %v877
    %v1146 = vpack.c.b16 %v882, %v878
    %v1147 = vpack.c.b16 %v883, %v879
    %v1148 = vpack.c.b16 %v884, %v880
    %v1149 = vpack.c.b16 %v889, %v885
    %v1150 = vpack.c.b16 %v890, %v886
    %v1151 = vpack.c.b16 %v891, %v887
    %v1152 = vpack.c.b16 %v892, %v888
    %v1153 = vpack.c.b16 %v897, %v893
    %v1154 = vpack.c.b16 %v898, %v894
    %v1155 = vpack.c.b16 %v899, %v895
    %v1156 = vpack.c.b16 %v900, %v896
    %v1157 = vpack.c.b16 %v905, %v901
    %v1158 = vpack.c.b16 %v906, %v902
    %v1159 = vpack.c.b16 %v907, %v903
    %v1160 = vpack.c.b16 %v908, %v904
    %v1161 = vpack.c.b16 %v913, %v909
    %v1162 = vpack.c.b16 %v914, %v910
    %v1163 = vpack.c.b16 %v915, %v911
    %v1164 = vpack.c.b16 %v916, %v912
    %v1165 = vpack.c.b16 %v921, %v917
    %v1166 = vpack.c.b16 %v922, %v918
    %v1167 = vpack.c.b16 %v923, %v919
    %v1168 = vpack.c.b16 %v924, %v920
    %v1169 = vpack.c.b16 %v929, %v925
    %v1170 = vpack.c.b16 %v930, %v926
    %v1171 = vpack.c.b16 %v931, %v927
    %v1172 = vpack.c.b16 %v932, %v928
    %v1173 = vpack.c.b16 %v937, %v933
    %v1174 = vpack.c.b16 %v938, %v934
    %v1175 = vpack.c.b16 %v939, %v935
    %v1176 = vpack.c.b16 %v940, %v936
    %v1177 = vpack.c.b16 %v945, %v941
    %v1178 = vpack.c.b16 %v946, %v942
    %v1179 = vpack.c.b16 %v947, %v943
    %v1180 = vpack.c.b16 %v948, %v944
    %v1181 = vpack.c.b16 %v953, %v949
    %v1182 = vpack.c.b16 %v954, %v950
    %v1183 = vpack.c.b16 %v955, %v951
    %v1184 = vpack.c.b16 %v956, %v952
    %v1185 = vpack.c.b16 %v961, %v957
    %v1186 = vpack.c.b16 %v962, %v958
    %v1187 = vpack.c.b16 %v963, %v959
    %v1188 = vpack.c.b16 %v964, %v960
    %v1189 = vpack.c.b16 %v969, %v965
    %v1190 = vpack.c.b16 %v970, %v966
    %v1191 = vpack.c.b16 %v971, %v967
    %v1192 = vpack.c.b16 %v972, %v968
    %v1193 = vpack.c.b16 %v977, %v973
    %v1194 = vpack.c.b16 %v978, %v974
    %v1195 = vpack.c.b16 %v979, %v975
    %v1196 = vpack.c.b16 %v980, %v976
    %v1197 = vpack.c.b16 %v985, %v981
    %v1198 = vpack.c.b16 %v986, %v982
    %v1199 = vpack.c.b16 %v987, %v983
    %v1200 = vpack.c.b16 %v988, %v984
    %v1201 = vpack.c.b16 %v993, %v989
    %v1202 = vpack.c.b16 %v994, %v990
    %v1203 = vpack.c.b16 %v995, %v991
    %v1204 = vpack.c.b16 %v996, %v992
    %v1205 = vpack.c.b16 %v1001, %v997
    %v1206 = vpack.c.b16 %v1002, %v998
    %v1207 = vpack.c.b16 %v1003, %v999
    %v1208 = vpack.c.b16 %v1004, %v1000
    %v1209 = vpack.c.b16 %v1009, %v1005
    %v1210 = vpack.c.b16 %v1010, %v1006
    %v1211 = vpack.c.b16 %v1011, %v1007
    %v1212 = vpack.c.b16 %v1012, %v1008
    %v1213 = vpack.c.b16 %v1017, %v1013
    %v1214 = vpack.c.b16 %v1018, %v1014
    %v1215 = vpack.c.b16 %v1019, %v1015
    %v1216 = vpack.c.b16 %v1020, %v1016
    %v1217 = vpack.c.b16 %v1025, %v1021
    %v1218 = vpack.c.b16 %v1026, %v1022
    %v1219 = vpack.c.b16 %v1027, %v1023
    %v1220 = vpack.c.b16 %v1028, %v1024
    %1413 = vmatprep.subr.bf16.mxu0 %v1030
    %1414 = vmatpush1.bf16.msra.mxu0 %v1029
    %1415 = vmatprep.subr.bf16.mxu0 %v1034
    %1416 = vmatpush1.bf16.msra.mxu0 %v1033
    %1417 = vmatprep.subr.bf16.mxu0 %v1038
    %1418 = vmatpush1.bf16.msra.mxu0 %v1037
    %1419 = vmatprep.subr.bf16.mxu0 %v1042
    %1420 = vmatpush1.bf16.msra.mxu0 %v1041
    %1421 = vmatprep.subr.bf16.mxu0 %v1046
    %1422 = vmatpush1.bf16.msra.mxu0 %v1045
    %1423 = vmatprep.subr.bf16.mxu0 %v1050
    %1424 = vmatpush1.bf16.msra.mxu0 %v1049
    %1425 = vmatprep.subr.bf16.mxu0 %v1054
    %1426 = vmatpush1.bf16.msra.mxu0 %v1053
    %1427 = vmatprep.subr.bf16.mxu0 %v1058
    %1428 = vmatpush1.bf16.msra.mxu0 %v1057
    %1429 = vmatprep.subr.bf16.mxu0 %v1062
    %1430 = vmatpush1.bf16.msra.mxu0 %v1061
    %1431 = vmatprep.subr.bf16.mxu0 %v1066
    %1432 = vmatpush1.bf16.msra.mxu0 %v1065
    %1433 = vmatprep.subr.bf16.mxu0 %v1070
    %1434 = vmatpush1.bf16.msra.mxu0 %v1069
    %1435 = vmatprep.subr.bf16.mxu0 %v1074
    %1436 = vmatpush1.bf16.msra.mxu0 %v1073
    %1437 = vmatprep.subr.bf16.mxu0 %v1078
    %1438 = vmatpush1.bf16.msra.mxu0 %v1077
    %1439 = vmatprep.subr.bf16.mxu0 %v1082
    %1440 = vmatpush1.bf16.msra.mxu0 %v1081
    %1441 = vmatprep.subr.bf16.mxu0 %v1086
    %1442 = vmatpush1.bf16.msra.mxu0 %v1085
    %1443 = vmatprep.subr.bf16.mxu0 %v1090
    %1444 = vmatpush1.bf16.msra.mxu0 %v1089
    %1445 = vmatprep.mubr.bf16.mxu0 %v444
    %1446 = vmatmul.mubr.bf16.gmra.mrb[0].mxu0 %v441
    %v1447 = vpop.f32.mrb[0].mxu0
    %v1448 = vadd.f32 %v288, %v1447
    %v1449 = vpop.f32.mrb[0].mxu0
    %v1450 = vadd.f32 %v292, %v1449
    %v1451 = vpop.f32.mrb[0].mxu0
    %v1452 = vadd.f32 %v288, %v1451
    %v1453 = vpop.f32.mrb[0].mxu0
    %v1454 = vadd.f32 %v292, %v1453
    %1455 = vdwg.mxu0
    %1456 = vmatprep.subr.bf16.mxu0 %v1094
    %1457 = vmatpush1.bf16.msra.mxu0 %v1093
    %1458 = vmatprep.subr.bf16.mxu0 %v1098
    %1459 = vmatpush1.bf16.msra.mxu0 %v1097
    %1460 = vmatprep.subr.bf16.mxu0 %v1102
    %1461 = vmatpush1.bf16.msra.mxu0 %v1101
    %1462 = vmatprep.subr.bf16.mxu0 %v1106
    %1463 = vmatpush1.bf16.msra.mxu0 %v1105
    %1464 = vmatprep.subr.bf16.mxu0 %v1110
    %1465 = vmatpush1.bf16.msra.mxu0 %v1109
    %1466 = vmatprep.subr.bf16.mxu0 %v1114
    %1467 = vmatpush1.bf16.msra.mxu0 %v1113
    %1468 = vmatprep.subr.bf16.mxu0 %v1118
    %1469 = vmatpush1.bf16.msra.mxu0 %v1117
    %1470 = vmatprep.subr.bf16.mxu0 %v1122
    %1471 = vmatpush1.bf16.msra.mxu0 %v1121
    %1472 = vmatprep.subr.bf16.mxu0 %v1126
    %1473 = vmatpush1.bf16.msra.mxu0 %v1125
    %1474 = vmatprep.subr.bf16.mxu0 %v1130
    %1475 = vmatpush1.bf16.msra.mxu0 %v1129
    %1476 = vmatprep.subr.bf16.mxu0 %v1134
    %1477 = vmatpush1.bf16.msra.mxu0 %v1133
    %1478 = vmatprep.subr.bf16.mxu0 %v1138
    %1479 = vmatpush1.bf16.msra.mxu0 %v1137
    %1480 = vmatprep.subr.bf16.mxu0 %v1142
    %1481 = vmatpush1.bf16.msra.mxu0 %v1141
    %1482 = vmatprep.subr.bf16.mxu0 %v1146
    %1483 = vmatpush1.bf16.msra.mxu0 %v1145
    %1484 = vmatprep.subr.bf16.mxu0 %v1150
    %1485 = vmatpush1.bf16.msra.mxu0 %v1149
    %1486 = vmatprep.subr.bf16.mxu0 %v1154
    %1487 = vmatpush1.bf16.msra.mxu0 %v1153
    %1488 = vmatprep.mubr.bf16.mxu0 %v445
    %1489 = vmatmul.mubr.bf16.gmra.mrb[0].mxu0 %v442
    %v1490 = vpop.f32.mrb[0].mxu0
    %v1491 = vadd.f32 %v1448, %v1490
    %v1492 = vpop.f32.mrb[0].mxu0
    %v1493 = vadd.f32 %v1450, %v1492
    %v1494 = vpop.f32.mrb[0].mxu0
    %v1495 = vadd.f32 %v1452, %v1494
    %v1496 = vpop.f32.mrb[0].mxu0
    %v1497 = vadd.f32 %v1454, %v1496
    %1498 = vdwg.mxu0
    %1499 = vmatprep.subr.bf16.mxu0 %v1158
    %1500 = vmatpush1.bf16.msra.mxu0 %v1157
    %1501 = vmatprep.subr.bf16.mxu0 %v1162
    %1502 = vmatpush1.bf16.msra.mxu0 %v1161
    %1503 = vmatprep.subr.bf16.mxu0 %v1166
    %1504 = vmatpush1.bf16.msra.mxu0 %v1165
    %1505 = vmatprep.subr.bf16.mxu0 %v1170
    %1506 = vmatpush1.bf16.msra.mxu0 %v1169
    %1507 = vmatprep.subr.bf16.mxu0 %v1174
    %1508 = vmatpush1.bf16.msra.mxu0 %v1173
    %1509 = vmatprep.subr.bf16.mxu0 %v1178
    %1510 = vmatpush1.bf16.msra.mxu0 %v1177
    %1511 = vmatprep.subr.bf16.mxu0 %v1182
    %1512 = vmatpush1.bf16.msra.mxu0 %v1181
    %1513 = vmatprep.subr.bf16.mxu0 %v1186
    %1514 = vmatpush1.bf16.msra.mxu0 %v1185
    %1515 = vmatprep.subr.bf16.mxu0 %v1190
    %1516 = vmatpush1.bf16.msra.mxu0 %v1189
    %1517 = vmatprep.subr.bf16.mxu0 %v1194
    %1518 = vmatpush1.bf16.msra.mxu0 %v1193
    %1519 = vmatprep.subr.bf16.mxu0 %v1198
    %1520 = vmatpush1.bf16.msra.mxu0 %v1197
    %1521 = vmatprep.subr.bf16.mxu0 %v1202
    %1522 = vmatpush1.bf16.msra.mxu0 %v1201
    %1523 = vmatprep.subr.bf16.mxu0 %v1206
    %1524 = vmatpush1.bf16.msra.mxu0 %v1205
    %1525 = vmatprep.subr.bf16.mxu0 %v1210
    %1526 = vmatpush1.bf16.msra.mxu0 %v1209
    %1527 = vmatprep.subr.bf16.mxu0 %v1214
    %1528 = vmatpush1.bf16.msra.mxu0 %v1213
    %1529 = vmatprep.subr.bf16.mxu0 %v1218
    %1530 = vmatpush1.bf16.msra.mxu0 %v1217
    %1531 = vmatprep.mubr.bf16.mxu0 %v446
    %1532 = vmatmul.mubr.bf16.gmra.mrb[0].mxu0 %v443
    %v1533 = vpop.f32.mrb[0].mxu0
    %v1534 = vadd.f32 %v1491, %v1533
    %v1535 = vpop.f32.mrb[0].mxu0
    %v1536 = vadd.f32 %v1493, %v1535
    %v1537 = vpop.f32.mrb[0].mxu0
    %v1538 = vadd.f32 %v1495, %v1537
    %v1539 = vpop.f32.mrb[0].mxu0
    %v1540 = vadd.f32 %v1497, %v1539
    %1541 = vdwg.mxu0
    %1542 = vmatprep.subr.bf16.mxu0 %v1032
    %1543 = vmatpush1.bf16.msra.mxu0 %v1031
    %1544 = vmatprep.subr.bf16.mxu0 %v1036
    %1545 = vmatpush1.bf16.msra.mxu0 %v1035
    %1546 = vmatprep.subr.bf16.mxu0 %v1040
    %1547 = vmatpush1.bf16.msra.mxu0 %v1039
    %1548 = vmatprep.subr.bf16.mxu0 %v1044
    %1549 = vmatpush1.bf16.msra.mxu0 %v1043
    %1550 = vmatprep.subr.bf16.mxu0 %v1048
    %1551 = vmatpush1.bf16.msra.mxu0 %v1047
    %1552 = vmatprep.subr.bf16.mxu0 %v1052
    %1553 = vmatpush1.bf16.msra.mxu0 %v1051
    %1554 = vmatprep.subr.bf16.mxu0 %v1056
    %1555 = vmatpush1.bf16.msra.mxu0 %v1055
    %1556 = vmatprep.subr.bf16.mxu0 %v1060
    %1557 = vmatpush1.bf16.msra.mxu0 %v1059
    %1558 = vmatprep.subr.bf16.mxu0 %v1064
    %1559 = vmatpush1.bf16.msra.mxu0 %v1063
    %1560 = vmatprep.subr.bf16.mxu0 %v1068
    %1561 = vmatpush1.bf16.msra.mxu0 %v1067
    %1562 = vmatprep.subr.bf16.mxu0 %v1072
    %1563 = vmatpush1.bf16.msra.mxu0 %v1071
    %1564 = vmatprep.subr.bf16.mxu0 %v1076
    %1565 = vmatpush1.bf16.msra.mxu0 %v1075
    %1566 = vmatprep.subr.bf16.mxu0 %v1080
    %1567 = vmatpush1.bf16.msra.mxu0 %v1079
    %1568 = vmatprep.subr.bf16.mxu0 %v1084
    %1569 = vmatpush1.bf16.msra.mxu0 %v1083
    %1570 = vmatprep.subr.bf16.mxu0 %v1088
    %1571 = vmatpush1.bf16.msra.mxu0 %v1087
    %1572 = vmatprep.subr.bf16.mxu0 %v1092
    %1573 = vmatpush1.bf16.msra.mxu0 %v1091
    %1574 = vmatprep.mubr.bf16.mxu0 %v444
    %1575 = vmatmul.mubr.bf16.gmra.mrb[0].mxu0 %v441
    %v1576 = vpop.f32.mrb[0].mxu0
    %v1577 = vadd.f32 %v296, %v1576
    %v1578 = vpop.f32.mrb[0].mxu0
    %v1579 = vadd.f32 %v300, %v1578
    %v1580 = vpop.f32.mrb[0].mxu0
    %v1581 = vadd.f32 %v296, %v1580
    %v1582 = vpop.f32.mrb[0].mxu0
    %v1583 = vadd.f32 %v300, %v1582
    %1584 = vdwg.mxu0
    %1585 = vmatprep.subr.bf16.mxu0 %v1096
    %1586 = vmatpush1.bf16.msra.mxu0 %v1095
    %1587 = vmatprep.subr.bf16.mxu0 %v1100
    %1588 = vmatpush1.bf16.msra.mxu0 %v1099
    %1589 = vmatprep.subr.bf16.mxu0 %v1104
    %1590 = vmatpush1.bf16.msra.mxu0 %v1103
    %1591 = vmatprep.subr.bf16.mxu0 %v1108
    %1592 = vmatpush1.bf16.msra.mxu0 %v1107
    %1593 = vmatprep.subr.bf16.mxu0 %v1112
    %1594 = vmatpush1.bf16.msra.mxu0 %v1111
    %1595 = vmatprep.subr.bf16.mxu0 %v1116
    %1596 = vmatpush1.bf16.msra.mxu0 %v1115
    %1597 = vmatprep.subr.bf16.mxu0 %v1120
    %1598 = vmatpush1.bf16.msra.mxu0 %v1119
    %1599 = vmatprep.subr.bf16.mxu0 %v1124
    %1600 = vmatpush1.bf16.msra.mxu0 %v1123
    %1601 = vmatprep.subr.bf16.mxu0 %v1128
    %1602 = vmatpush1.bf16.msra.mxu0 %v1127
    %1603 = vmatprep.subr.bf16.mxu0 %v1132
    %1604 = vmatpush1.bf16.msra.mxu0 %v1131
    %1605 = vmatprep.subr.bf16.mxu0 %v1136
    %1606 = vmatpush1.bf16.msra.mxu0 %v1135
    %1607 = vmatprep.subr.bf16.mxu0 %v1140
    %1608 = vmatpush1.bf16.msra.mxu0 %v1139
    %1609 = vmatprep.subr.bf16.mxu0 %v1144
    %1610 = vmatpush1.bf16.msra.mxu0 %v1143
    %1611 = vmatprep.subr.bf16.mxu0 %v1148
    %1612 = vmatpush1.bf16.msra.mxu0 %v1147
    %1613 = vmatprep.subr.bf16.mxu0 %v1152
    %1614 = vmatpush1.bf16.msra.mxu0 %v1151
    %1615 = vmatprep.subr.bf16.mxu0 %v1156
    %1616 = vmatpush1.bf16.msra.mxu0 %v1155
    %1617 = vmatprep.mubr.bf16.mxu0 %v445
    %1618 = vmatmul.mubr.bf16.gmra.mrb[0].mxu0 %v442
    %v1619 = vpop.f32.mrb[0].mxu0
    %v1620 = vadd.f32 %v1577, %v1619
    %v1621 = vpop.f32.mrb[0].mxu0
    %v1622 = vadd.f32 %v1579, %v1621
    %v1623 = vpop.f32.mrb[0].mxu0
    %v1624 = vadd.f32 %v1581, %v1623
    %v1625 = vpop.f32.mrb[0].mxu0
    %v1626 = vadd.f32 %v1583, %v1625
    %1627 = vdwg.mxu0
    %1628 = vmatprep.subr.bf16.mxu0 %v1160
    %1629 = vmatpush1.bf16.msra.mxu0 %v1159
    %1630 = vmatprep.subr.bf16.mxu0 %v1164
    %1631 = vmatpush1.bf16.msra.mxu0 %v1163
    %1632 = vmatprep.subr.bf16.mxu0 %v1168
    %1633 = vmatpush1.bf16.msra.mxu0 %v1167
    %1634 = vmatprep.subr.bf16.mxu0 %v1172
    %1635 = vmatpush1.bf16.msra.mxu0 %v1171
    %1636 = vmatprep.subr.bf16.mxu0 %v1176
    %1637 = vmatpush1.bf16.msra.mxu0 %v1175
    %1638 = vmatprep.subr.bf16.mxu0 %v1180
    %1639 = vmatpush1.bf16.msra.mxu0 %v1179
    %1640 = vmatprep.subr.bf16.mxu0 %v1184
    %1641 = vmatpush1.bf16.msra.mxu0 %v1183
    %1642 = vmatprep.subr.bf16.mxu0 %v1188
    %1643 = vmatpush1.bf16.msra.mxu0 %v1187
    %1644 = vmatprep.subr.bf16.mxu0 %v1192
    %1645 = vmatpush1.bf16.msra.mxu0 %v1191
    %1646 = vmatprep.subr.bf16.mxu0 %v1196
    %1647 = vmatpush1.bf16.msra.mxu0 %v1195
    %1648 = vmatprep.subr.bf16.mxu0 %v1200
    %1649 = vmatpush1.bf16.msra.mxu0 %v1199
    %1650 = vmatprep.subr.bf16.mxu0 %v1204
    %1651 = vmatpush1.bf16.msra.mxu0 %v1203
    %1652 = vmatprep.subr.bf16.mxu0 %v1208
    %1653 = vmatpush1.bf16.msra.mxu0 %v1207
    %1654 = vmatprep.subr.bf16.mxu0 %v1212
    %1655 = vmatpush1.bf16.msra.mxu0 %v1211
    %1656 = vmatprep.subr.bf16.mxu0 %v1216
    %1657 = vmatpush1.bf16.msra.mxu0 %v1215
    %1658 = vmatprep.subr.bf16.mxu0 %v1220
    %1659 = vmatpush1.bf16.msra.mxu0 %v1219
    %1660 = vmatprep.mubr.bf16.mxu0 %v446
    %1661 = vmatmul.mubr.bf16.gmra.mrb[0].mxu0 %v443
    %v1662 = vpop.f32.mrb[0].mxu0
    %v1663 = vadd.f32 %v1620, %v1662
    %v1664 = vpop.f32.mrb[0].mxu0
    %v1665 = vadd.f32 %v1622, %v1664
    %v1666 = vpop.f32.mrb[0].mxu0
    %v1667 = vadd.f32 %v1624, %v1666
    %v1668 = vpop.f32.mrb[0].mxu0
    %v1669 = vadd.f32 %v1626, %v1668
    %1670 = vdwg.mxu0
    %v1671 = vmax.f32 %v1534, 0.0
    %v1672 = vmax.f32 %v1536, 0.0
    %v1673 = vmax.f32 %v1663, 0.0
    %v1674 = vmax.f32 %v1665, 0.0
    %v1675 = vmax.f32 %v1538, 0.0
    %v1676 = vmax.f32 %v1540, 0.0
    %v1677 = vmax.f32 %v1667, 0.0
    %v1678 = vmax.f32 %v1669, 0.0
    %v1679 = vpack.c.bf16 %v1675, %v1671
    %v1680 = vpack.c.bf16 %v1676, %v1672
    %v1681 = vpack.c.bf16 %v1677, %v1673
    %v1682 = vpack.c.bf16 %v1678, %v1674
    %v1683 = vld [vmem:[#allocation7] sm:$0xff]
    %v1684 = vld [vmem:[#allocation7 + $0x8] sm:$0xff]
    %v1685 = vld [vmem:[#allocation7 + $0x10] sm:$0xff]
    %v1686 = vld [vmem:[#allocation7 + $0x18] sm:$0xff]
    %v1687 = vld [vmem:[#allocation7 + $0x20] sm:$0xff]
    %v1688 = vld [vmem:[#allocation7 + $0x28] sm:$0xff]
    %v1689 = vld [vmem:[#allocation7 + $0x30] sm:$0xff]
    %v1690 = vld [vmem:[#allocation7 + $0x38] sm:$0xff]
    %v1691 = vld [vmem:[#allocation7 + $0x40] sm:$0xff]
    %v1692 = vld [vmem:[#allocation7 + $0x48] sm:$0xff]
    %v1693 = vld [vmem:[#allocation7 + $0x50] sm:$0xff]
    %v1694 = vld [vmem:[#allocation7 + $0x58] sm:$0xff]
    %v1695 = vld [vmem:[#allocation7 + $0x60] sm:$0xff]
    %v1696 = vld [vmem:[#allocation7 + $0x68] sm:$0xff]
    %v1697 = vld [vmem:[#allocation7 + $0x70] sm:$0xff]
    %v1698 = vld [vmem:[#allocation7 + $0x78] sm:$0xff]
    %v1699 = vld [vmem:[#allocation7 + $0x80] sm:$0xff]
    %v1700 = vld [vmem:[#allocation7 + $0x88] sm:$0xff]
    %v1701 = vld [vmem:[#allocation7 + $0x90] sm:$0xff]
    %v1702 = vld [vmem:[#allocation7 + $0x98] sm:$0xff]
    %v1703 = vld [vmem:[#allocation7 + $0xa0] sm:$0xff]
    %v1704 = vld [vmem:[#allocation7 + $0xa8] sm:$0xff]
    %v1705 = vld [vmem:[#allocation7 + $0xb0] sm:$0xff]
    %v1706 = vld [vmem:[#allocation7 + $0xb8] sm:$0xff]
    %v1707 = vld [vmem:[#allocation7 + $0xc0] sm:$0xff]
    %v1708 = vld [vmem:[#allocation7 + $0xc8] sm:$0xff]
    %v1709 = vld [vmem:[#allocation7 + $0xd0] sm:$0xff]
    %v1710 = vld [vmem:[#allocation7 + $0xd8] sm:$0xff]
    %v1711 = vld [vmem:[#allocation7 + $0xe0] sm:$0xff]
    %v1712 = vld [vmem:[#allocation7 + $0xe8] sm:$0xff]
    %v1713 = vld [vmem:[#allocation7 + $0xf0] sm:$0xff]
    %v1714 = vld [vmem:[#allocation7 + $0xf8] sm:$0xff]
    %v1715 = vld [vmem:[#allocation7 + $0x100] sm:$0xff]
    %v1716 = vld [vmem:[#allocation7 + $0x108] sm:$0xff]
    %v1717 = vld [vmem:[#allocation7 + $0x110] sm:$0xff]
    %v1718 = vld [vmem:[#allocation7 + $0x118] sm:$0xff]
    %v1719 = vld [vmem:[#allocation7 + $0x120] sm:$0xff]
    %v1720 = vld [vmem:[#allocation7 + $0x128] sm:$0xff]
    %v1721 = vld [vmem:[#allocation7 + $0x130] sm:$0xff]
    %v1722 = vld [vmem:[#allocation7 + $0x138] sm:$0xff]
    %v1723 = vld [vmem:[#allocation7 + $0x140] sm:$0xff]
    %v1724 = vld [vmem:[#allocation7 + $0x148] sm:$0xff]
    %v1725 = vld [vmem:[#allocation7 + $0x150] sm:$0xff]
    %v1726 = vld [vmem:[#allocation7 + $0x158] sm:$0xff]
    %v1727 = vld [vmem:[#allocation7 + $0x160] sm:$0xff]
    %v1728 = vld [vmem:[#allocation7 + $0x168] sm:$0xff]
    %v1729 = vld [vmem:[#allocation7 + $0x170] sm:$0xff]
    %v1730 = vld [vmem:[#allocation7 + $0x178] sm:$0xff]
    %v1731 = vld [vmem:[#allocation7 + $0x180] sm:$0xff]
    %v1732 = vld [vmem:[#allocation7 + $0x188] sm:$0xff]
    %v1733 = vld [vmem:[#allocation7 + $0x190] sm:$0xff]
    %v1734 = vld [vmem:[#allocation7 + $0x198] sm:$0xff]
    %v1735 = vld [vmem:[#allocation7 + $0x1a0] sm:$0xff]
    %v1736 = vld [vmem:[#allocation7 + $0x1a8] sm:$0xff]
    %v1737 = vld [vmem:[#allocation7 + $0x1b0] sm:$0xff]
    %v1738 = vld [vmem:[#allocation7 + $0x1b8] sm:$0xff]
    %v1739 = vld [vmem:[#allocation7 + $0x1c0] sm:$0xff]
    %v1740 = vld [vmem:[#allocation7 + $0x1c8] sm:$0xff]
    %v1741 = vld [vmem:[#allocation7 + $0x1d0] sm:$0xff]
    %v1742 = vld [vmem:[#allocation7 + $0x1d8] sm:$0xff]
    %v1743 = vld [vmem:[#allocation7 + $0x1e0] sm:$0xff]
    %v1744 = vld [vmem:[#allocation7 + $0x1e8] sm:$0xff]
    %v1745 = vld [vmem:[#allocation7 + $0x1f0] sm:$0xff]
    %v1746 = vld [vmem:[#allocation7 + $0x1f8] sm:$0xff]
    %v1747 = vld [vmem:[%s4] sm:$0x3]
    %v1749 = vlaneseq
    %v1750 = vshrl.u32 %v1749, 7
    %v1751 = vsub.s32 0, %v1750
    %v1752 = vrot.slane %v1747, %v1751
    %v1753 = vlaneseq
    %v1754 = vshrl.u32 %v1753, 7
    %v1755 = vsub.s32 1, %v1754
    %v1756 = vrot.slane %v1747, %v1755
    %v1823 = vunpack.c.l.b16 %v1683
    %v1824 = vunpack.c.h.b16 %v1683
    %v1825 = vunpack.c.l.b16 %v1684
    %v1826 = vunpack.c.h.b16 %v1684
    %v1827 = vunpack.c.l.b16 %v1685
    %v1828 = vunpack.c.h.b16 %v1685
    %v1829 = vunpack.c.l.b16 %v1686
    %v1830 = vunpack.c.h.b16 %v1686
    %v1831 = vunpack.c.l.b16 %v1687
    %v1832 = vunpack.c.h.b16 %v1687
    %v1833 = vunpack.c.l.b16 %v1688
    %v1834 = vunpack.c.h.b16 %v1688
    %v1835 = vunpack.c.l.b16 %v1689
    %v1836 = vunpack.c.h.b16 %v1689
    %v1837 = vunpack.c.l.b16 %v1690
    %v1838 = vunpack.c.h.b16 %v1690
    %v1839 = vunpack.c.l.b16 %v1691
    %v1840 = vunpack.c.h.b16 %v1691
    %v1841 = vunpack.c.l.b16 %v1692
    %v1842 = vunpack.c.h.b16 %v1692
    %v1843 = vunpack.c.l.b16 %v1693
    %v1844 = vunpack.c.h.b16 %v1693
    %v1845 = vunpack.c.l.b16 %v1694
    %v1846 = vunpack.c.h.b16 %v1694
    %v1847 = vunpack.c.l.b16 %v1695
    %v1848 = vunpack.c.h.b16 %v1695
    %v1849 = vunpack.c.l.b16 %v1696
    %v1850 = vunpack.c.h.b16 %v1696
    %v1851 = vunpack.c.l.b16 %v1697
    %v1852 = vunpack.c.h.b16 %v1697
    %v1853 = vunpack.c.l.b16 %v1698
    %v1854 = vunpack.c.h.b16 %v1698
    %v1855 = vunpack.c.l.b16 %v1699
    %v1856 = vunpack.c.h.b16 %v1699
    %v1857 = vunpack.c.l.b16 %v1700
    %v1858 = vunpack.c.h.b16 %v1700
    %v1859 = vunpack.c.l.b16 %v1701
    %v1860 = vunpack.c.h.b16 %v1701
    %v1861 = vunpack.c.l.b16 %v1702
    %v1862 = vunpack.c.h.b16 %v1702
    %v1863 = vunpack.c.l.b16 %v1703
    %v1864 = vunpack.c.h.b16 %v1703
    %v1865 = vunpack.c.l.b16 %v1704
    %v1866 = vunpack.c.h.b16 %v1704
    %v1867 = vunpack.c.l.b16 %v1705
    %v1868 = vunpack.c.h.b16 %v1705
    %v1869 = vunpack.c.l.b16 %v1706
    %v1870 = vunpack.c.h.b16 %v1706
    %v1871 = vunpack.c.l.b16 %v1707
    %v1872 = vunpack.c.h.b16 %v1707
    %v1873 = vunpack.c.l.b16 %v1708
    %v1874 = vunpack.c.h.b16 %v1708
    %v1875 = vunpack.c.l.b16 %v1709
    %v1876 = vunpack.c.h.b16 %v1709
    %v1877 = vunpack.c.l.b16 %v1710
    %v1878 = vunpack.c.h.b16 %v1710
    %v1879 = vunpack.c.l.b16 %v1711
    %v1880 = vunpack.c.h.b16 %v1711
    %v1881 = vunpack.c.l.b16 %v1712
    %v1882 = vunpack.c.h.b16 %v1712
    %v1883 = vunpack.c.l.b16 %v1713
    %v1884 = vunpack.c.h.b16 %v1713
    %v1885 = vunpack.c.l.b16 %v1714
    %v1886 = vunpack.c.h.b16 %v1714
    %v1887 = vunpack.c.l.b16 %v1715
    %v1888 = vunpack.c.h.b16 %v1715
    %v1889 = vunpack.c.l.b16 %v1716
    %v1890 = vunpack.c.h.b16 %v1716
    %v1891 = vunpack.c.l.b16 %v1717
    %v1892 = vunpack.c.h.b16 %v1717
    %v1893 = vunpack.c.l.b16 %v1718
    %v1894 = vunpack.c.h.b16 %v1718
    %v1895 = vunpack.c.l.b16 %v1719
    %v1896 = vunpack.c.h.b16 %v1719
    %v1897 = vunpack.c.l.b16 %v1720
    %v1898 = vunpack.c.h.b16 %v1720
    %v1899 = vunpack.c.l.b16 %v1721
    %v1900 = vunpack.c.h.b16 %v1721
    %v1901 = vunpack.c.l.b16 %v1722
    %v1902 = vunpack.c.h.b16 %v1722
    %v1903 = vunpack.c.l.b16 %v1723
    %v1904 = vunpack.c.h.b16 %v1723
    %v1905 = vunpack.c.l.b16 %v1724
    %v1906 = vunpack.c.h.b16 %v1724
    %v1907 = vunpack.c.l.b16 %v1725
    %v1908 = vunpack.c.h.b16 %v1725
    %v1909 = vunpack.c.l.b16 %v1726
    %v1910 = vunpack.c.h.b16 %v1726
    %v1911 = vunpack.c.l.b16 %v1727
    %v1912 = vunpack.c.h.b16 %v1727
    %v1913 = vunpack.c.l.b16 %v1728
    %v1914 = vunpack.c.h.b16 %v1728
    %v1915 = vunpack.c.l.b16 %v1729
    %v1916 = vunpack.c.h.b16 %v1729
    %v1917 = vunpack.c.l.b16 %v1730
    %v1918 = vunpack.c.h.b16 %v1730
    %v1919 = vunpack.c.l.b16 %v1731
    %v1920 = vunpack.c.h.b16 %v1731
    %v1921 = vunpack.c.l.b16 %v1732
    %v1922 = vunpack.c.h.b16 %v1732
    %v1923 = vunpack.c.l.b16 %v1733
    %v1924 = vunpack.c.h.b16 %v1733
    %v1925 = vunpack.c.l.b16 %v1734
    %v1926 = vunpack.c.h.b16 %v1734
    %v1927 = vunpack.c.l.b16 %v1735
    %v1928 = vunpack.c.h.b16 %v1735
    %v1929 = vunpack.c.l.b16 %v1736
    %v1930 = vunpack.c.h.b16 %v1736
    %v1931 = vunpack.c.l.b16 %v1737
    %v1932 = vunpack.c.h.b16 %v1737
    %v1933 = vunpack.c.l.b16 %v1738
    %v1934 = vunpack.c.h.b16 %v1738
    %v1935 = vunpack.c.l.b16 %v1739
    %v1936 = vunpack.c.h.b16 %v1739
    %v1937 = vunpack.c.l.b16 %v1740
    %v1938 = vunpack.c.h.b16 %v1740
    %v1939 = vunpack.c.l.b16 %v1741
    %v1940 = vunpack.c.h.b16 %v1741
    %v1941 = vunpack.c.l.b16 %v1742
    %v1942 = vunpack.c.h.b16 %v1742
    %v1943 = vunpack.c.l.b16 %v1743
    %v1944 = vunpack.c.h.b16 %v1743
    %v1945 = vunpack.c.l.b16 %v1744
    %v1946 = vunpack.c.h.b16 %v1744
    %v1947 = vunpack.c.l.b16 %v1745
    %v1948 = vunpack.c.h.b16 %v1745
    %v1949 = vunpack.c.l.b16 %v1746
    %v1950 = vunpack.c.h.b16 %v1746
    %v1951 = vpack.c.b16 %v1825, %v1823
    %v1952 = vpack.c.b16 %v1826, %v1824
    %v1953 = vpack.c.b16 %v1829, %v1827
    %v1954 = vpack.c.b16 %v1830, %v1828
    %v1955 = vpack.c.b16 %v1833, %v1831
    %v1956 = vpack.c.b16 %v1834, %v1832
    %v1957 = vpack.c.b16 %v1837, %v1835
    %v1958 = vpack.c.b16 %v1838, %v1836
    %v1959 = vpack.c.b16 %v1841, %v1839
    %v1960 = vpack.c.b16 %v1842, %v1840
    %v1961 = vpack.c.b16 %v1845, %v1843
    %v1962 = vpack.c.b16 %v1846, %v1844
    %v1963 = vpack.c.b16 %v1849, %v1847
    %v1964 = vpack.c.b16 %v1850, %v1848
    %v1965 = vpack.c.b16 %v1853, %v1851
    %v1966 = vpack.c.b16 %v1854, %v1852
    %v1967 = vpack.c.b16 %v1857, %v1855
    %v1968 = vpack.c.b16 %v1858, %v1856
    %v1969 = vpack.c.b16 %v1861, %v1859
    %v1970 = vpack.c.b16 %v1862, %v1860
    %v1971 = vpack.c.b16 %v1865, %v1863
    %v1972 = vpack.c.b16 %v1866, %v1864
    %v1973 = vpack.c.b16 %v1869, %v1867
    %v1974 = vpack.c.b16 %v1870, %v1868
    %v1975 = vpack.c.b16 %v1873, %v1871
    %v1976 = vpack.c.b16 %v1874, %v1872
    %v1977 = vpack.c.b16 %v1877, %v1875
    %v1978 = vpack.c.b16 %v1878, %v1876
    %v1979 = vpack.c.b16 %v1881, %v1879
    %v1980 = vpack.c.b16 %v1882, %v1880
    %v1981 = vpack.c.b16 %v1885, %v1883
    %v1982 = vpack.c.b16 %v1886, %v1884
    %v1983 = vpack.c.b16 %v1889, %v1887
    %v1984 = vpack.c.b16 %v1890, %v1888
    %v1985 = vpack.c.b16 %v1893, %v1891
    %v1986 = vpack.c.b16 %v1894, %v1892
    %v1987 = vpack.c.b16 %v1897, %v1895
    %v1988 = vpack.c.b16 %v1898, %v1896
    %v1989 = vpack.c.b16 %v1901, %v1899
    %v1990 = vpack.c.b16 %v1902, %v1900
    %v1991 = vpack.c.b16 %v1905, %v1903
    %v1992 = vpack.c.b16 %v1906, %v1904
    %v1993 = vpack.c.b16 %v1909, %v1907
    %v1994 = vpack.c.b16 %v1910, %v1908
    %v1995 = vpack.c.b16 %v1913, %v1911
    %v1996 = vpack.c.b16 %v1914, %v1912
    %v1997 = vpack.c.b16 %v1917, %v1915
    %v1998 = vpack.c.b16 %v1918, %v1916
    %v1999 = vpack.c.b16 %v1921, %v1919
    %v2000 = vpack.c.b16 %v1922, %v1920
    %v2001 = vpack.c.b16 %v1925, %v1923
    %v2002 = vpack.c.b16 %v1926, %v1924
    %v2003 = vpack.c.b16 %v1929, %v1927
    %v2004 = vpack.c.b16 %v1930, %v1928
    %v2005 = vpack.c.b16 %v1933, %v1931
    %v2006 = vpack.c.b16 %v1934, %v1932
    %v2007 = vpack.c.b16 %v1937, %v1935
    %v2008 = vpack.c.b16 %v1938, %v1936
    %v2009 = vpack.c.b16 %v1941, %v1939
    %v2010 = vpack.c.b16 %v1942, %v1940
    %v2011 = vpack.c.b16 %v1945, %v1943
    %v2012 = vpack.c.b16 %v1946, %v1944
    %v2013 = vpack.c.b16 %v1949, %v1947
    %v2014 = vpack.c.b16 %v1950, %v1948
    %2079 = vmatprep.subr.bf16.mxu0 %v1952
    %2080 = vmatpush1.bf16.msra.mxu0 %v1951
    %2081 = vmatprep.subr.bf16.mxu0 %v1954
    %2082 = vmatpush1.bf16.msra.mxu0 %v1953
    %2083 = vmatprep.subr.bf16.mxu0 %v1956
    %2084 = vmatpush1.bf16.msra.mxu0 %v1955
    %2085 = vmatprep.subr.bf16.mxu0 %v1958
    %2086 = vmatpush1.bf16.msra.mxu0 %v1957
    %2087 = vmatprep.subr.bf16.mxu0 %v1960
    %2088 = vmatpush1.bf16.msra.mxu0 %v1959
    %2089 = vmatprep.subr.bf16.mxu0 %v1962
    %2090 = vmatpush1.bf16.msra.mxu0 %v1961
    %2091 = vmatprep.subr.bf16.mxu0 %v1964
    %2092 = vmatpush1.bf16.msra.mxu0 %v1963
    %2093 = vmatprep.subr.bf16.mxu0 %v1966
    %2094 = vmatpush1.bf16.msra.mxu0 %v1965
    %2095 = vmatprep.subr.bf16.mxu0 %v1968
    %2096 = vmatpush1.bf16.msra.mxu0 %v1967
    %2097 = vmatprep.subr.bf16.mxu0 %v1970
    %2098 = vmatpush1.bf16.msra.mxu0 %v1969
    %2099 = vmatprep.subr.bf16.mxu0 %v1972
    %2100 = vmatpush1.bf16.msra.mxu0 %v1971
    %2101 = vmatprep.subr.bf16.mxu0 %v1974
    %2102 = vmatpush1.bf16.msra.mxu0 %v1973
    %2103 = vmatprep.subr.bf16.mxu0 %v1976
    %2104 = vmatpush1.bf16.msra.mxu0 %v1975
    %2105 = vmatprep.subr.bf16.mxu0 %v1978
    %2106 = vmatpush1.bf16.msra.mxu0 %v1977
    %2107 = vmatprep.subr.bf16.mxu0 %v1980
    %2108 = vmatpush1.bf16.msra.mxu0 %v1979
    %2109 = vmatprep.subr.bf16.mxu0 %v1982
    %2110 = vmatpush1.bf16.msra.mxu0 %v1981
    %2111 = vmatprep.mubr.bf16.mxu0 %v1680
    %2112 = vmatmul.mubr.bf16.gmra.mrb[0].mxu0 %v1679
    %v2113 = vpop.f32.mrb[0].mxu0
    %v2114 = vadd.f32 %v1752, %v2113
    %v2115 = vpop.f32.mrb[0].mxu0
    %v2116 = vadd.f32 %v1756, %v2115
    %v2117 = vpop.f32.mrb[0].mxu0
    %v2118 = vadd.f32 %v1752, %v2117
    %v2119 = vpop.f32.mrb[0].mxu0
    %v2120 = vadd.f32 %v1756, %v2119
    %2121 = vdwg.mxu0
    %2122 = vmatprep.subr.bf16.mxu0 %v1984
    %2123 = vmatpush1.bf16.msra.mxu0 %v1983
    %2124 = vmatprep.subr.bf16.mxu0 %v1986
    %2125 = vmatpush1.bf16.msra.mxu0 %v1985
    %2126 = vmatprep.subr.bf16.mxu0 %v1988
    %2127 = vmatpush1.bf16.msra.mxu0 %v1987
    %2128 = vmatprep.subr.bf16.mxu0 %v1990
    %2129 = vmatpush1.bf16.msra.mxu0 %v1989
    %2130 = vmatprep.subr.bf16.mxu0 %v1992
    %2131 = vmatpush1.bf16.msra.mxu0 %v1991
    %2132 = vmatprep.subr.bf16.mxu0 %v1994
    %2133 = vmatpush1.bf16.msra.mxu0 %v1993
    %2134 = vmatprep.subr.bf16.mxu0 %v1996
    %2135 = vmatpush1.bf16.msra.mxu0 %v1995
    %2136 = vmatprep.subr.bf16.mxu0 %v1998
    %2137 = vmatpush1.bf16.msra.mxu0 %v1997
    %2138 = vmatprep.subr.bf16.mxu0 %v2000
    %2139 = vmatpush1.bf16.msra.mxu0 %v1999
    %2140 = vmatprep.subr.bf16.mxu0 %v2002
    %2141 = vmatpush1.bf16.msra.mxu0 %v2001
    %2142 = vmatprep.subr.bf16.mxu0 %v2004
    %2143 = vmatpush1.bf16.msra.mxu0 %v2003
    %2144 = vmatprep.subr.bf16.mxu0 %v2006
    %2145 = vmatpush1.bf16.msra.mxu0 %v2005
    %2146 = vmatprep.subr.bf16.mxu0 %v2008
    %2147 = vmatpush1.bf16.msra.mxu0 %v2007
    %2148 = vmatprep.subr.bf16.mxu0 %v2010
    %2149 = vmatpush1.bf16.msra.mxu0 %v2009
    %2150 = vmatprep.subr.bf16.mxu0 %v2012
    %2151 = vmatpush1.bf16.msra.mxu0 %v2011
    %2152 = vmatprep.subr.bf16.mxu0 %v2014
    %2153 = vmatpush1.bf16.msra.mxu0 %v2013
    %2154 = vmatprep.mubr.bf16.mxu0 %v1682
    %2155 = vmatmul.mubr.bf16.gmra.mrb[0].mxu0 %v1681
    %v2156 = vpop.f32.mrb[0].mxu0
    %v2157 = vadd.f32 %v2114, %v2156
    %v2158 = vpop.f32.mrb[0].mxu0
    %v2159 = vadd.f32 %v2116, %v2158
    %v2160 = vpop.f32.mrb[0].mxu0
    %v2161 = vadd.f32 %v2118, %v2160
    %v2162 = vpop.f32.mrb[0].mxu0
    %v2163 = vadd.f32 %v2120, %v2162
    %2164 = vdwg.mxu0
    %v2165 = vmax.f32 %v2157, 0.0
    %v2166 = vmax.f32 %v2159, 0.0
    %v2167 = vmax.f32 %v2161, 0.0
    %v2168 = vmax.f32 %v2163, 0.0
    %v2169 = vpack.c.bf16 %v2167, %v2165
    %v2170 = vpack.c.bf16 %v2168, %v2166
    %v2171 = vld [vmem:[#allocation8] sm:$0xf]
    %v2172 = vld [vmem:[#allocation8 + $0x4] sm:$0xf]
    %v2173 = vld [vmem:[#allocation8 + $0x8] sm:$0xf]
    %v2174 = vld [vmem:[#allocation8 + $0xc] sm:$0xf]
    %v2175 = vld [vmem:[#allocation8 + $0x10] sm:$0xf]
    %v2176 = vld [vmem:[#allocation8 + $0x14] sm:$0xf]
    %v2177 = vld [vmem:[#allocation8 + $0x18] sm:$0xf]
    %v2178 = vld [vmem:[#allocation8 + $0x1c] sm:$0xf]
    %v2179 = vld [vmem:[#allocation8 + $0x20] sm:$0xf]
    %v2180 = vld [vmem:[#allocation8 + $0x24] sm:$0xf]
    %v2181 = vld [vmem:[#allocation8 + $0x28] sm:$0xf]
    %v2182 = vld [vmem:[#allocation8 + $0x2c] sm:$0xf]
    %v2183 = vld [vmem:[#allocation8 + $0x30] sm:$0xf]
    %v2184 = vld [vmem:[#allocation8 + $0x34] sm:$0xf]
    %v2185 = vld [vmem:[#allocation8 + $0x38] sm:$0xf]
    %v2186 = vld [vmem:[#allocation8 + $0x3c] sm:$0xf]
    %v2187 = vld [vmem:[#allocation8 + $0x40] sm:$0xf]
    %v2188 = vld [vmem:[#allocation8 + $0x44] sm:$0xf]
    %v2189 = vld [vmem:[#allocation8 + $0x48] sm:$0xf]
    %v2190 = vld [vmem:[#allocation8 + $0x4c] sm:$0xf]
    %v2191 = vld [vmem:[#allocation8 + $0x50] sm:$0xf]
    %v2192 = vld [vmem:[#allocation8 + $0x54] sm:$0xf]
    %v2193 = vld [vmem:[#allocation8 + $0x58] sm:$0xf]
    %v2194 = vld [vmem:[#allocation8 + $0x5c] sm:$0xf]
    %v2195 = vld [vmem:[#allocation8 + $0x60] sm:$0xf]
    %v2196 = vld [vmem:[#allocation8 + $0x64] sm:$0xf]
    %v2197 = vld [vmem:[#allocation8 + $0x68] sm:$0xf]
    %v2198 = vld [vmem:[#allocation8 + $0x6c] sm:$0xf]
    %v2199 = vld [vmem:[#allocation8 + $0x70] sm:$0xf]
    %v2200 = vld [vmem:[#allocation8 + $0x74] sm:$0xf]
    %v2201 = vld [vmem:[#allocation8 + $0x78] sm:$0xf]
    %v2202 = vld [vmem:[#allocation8 + $0x7c] sm:$0xf]
    %v2203 = vld [vmem:[%s6] sm:$0x1]
    %v2205 = vlaneseq
    %v2206 = vshrl.u32 %v2205, 7
    %v2207 = vsub.s32 0, %v2206
    %v2208 = vrot.slane %v2203, %v2207
    %v2242 = vunpack.c.l.b16 %v2171
    %v2243 = vunpack.c.l.b16 %v2172
    %v2244 = vunpack.c.l.b16 %v2173
    %v2245 = vunpack.c.l.b16 %v2174
    %v2246 = vunpack.c.l.b16 %v2175
    %v2247 = vunpack.c.l.b16 %v2176
    %v2248 = vunpack.c.l.b16 %v2177
    %v2249 = vunpack.c.l.b16 %v2178
    %v2250 = vunpack.c.l.b16 %v2179
    %v2251 = vunpack.c.l.b16 %v2180
    %v2252 = vunpack.c.l.b16 %v2181
    %v2253 = vunpack.c.l.b16 %v2182
    %v2254 = vunpack.c.l.b16 %v2183
    %v2255 = vunpack.c.l.b16 %v2184
    %v2256 = vunpack.c.l.b16 %v2185
    %v2257 = vunpack.c.l.b16 %v2186
    %v2258 = vunpack.c.l.b16 %v2187
    %v2259 = vunpack.c.l.b16 %v2188
    %v2260 = vunpack.c.l.b16 %v2189
    %v2261 = vunpack.c.l.b16 %v2190
    %v2262 = vunpack.c.l.b16 %v2191
    %v2263 = vunpack.c.l.b16 %v2192
    %v2264 = vunpack.c.l.b16 %v2193
    %v2265 = vunpack.c.l.b16 %v2194
    %v2266 = vunpack.c.l.b16 %v2195
    %v2267 = vunpack.c.l.b16 %v2196
    %v2268 = vunpack.c.l.b16 %v2197
    %v2269 = vunpack.c.l.b16 %v2198
    %v2270 = vunpack.c.l.b16 %v2199
    %v2271 = vunpack.c.l.b16 %v2200
    %v2272 = vunpack.c.l.b16 %v2201
    %v2273 = vunpack.c.l.b16 %v2202
    %v2274 = vpack.c.b16 %v2243, %v2242
    %v2275 = vpack.c.b16 %v2245, %v2244
    %v2276 = vpack.c.b16 %v2247, %v2246
    %v2277 = vpack.c.b16 %v2249, %v2248
    %v2278 = vpack.c.b16 %v2251, %v2250
    %v2279 = vpack.c.b16 %v2253, %v2252
    %v2280 = vpack.c.b16 %v2255, %v2254
    %v2281 = vpack.c.b16 %v2257, %v2256
    %v2282 = vpack.c.b16 %v2259, %v2258
    %v2283 = vpack.c.b16 %v2261, %v2260
    %v2284 = vpack.c.b16 %v2263, %v2262
    %v2285 = vpack.c.b16 %v2265, %v2264
    %v2286 = vpack.c.b16 %v2267, %v2266
    %v2287 = vpack.c.b16 %v2269, %v2268
    %v2288 = vpack.c.b16 %v2271, %v2270
    %v2289 = vpack.c.b16 %v2273, %v2272
    %2306 = vmatprep.subr.bf16.mxu0 0
    %2307 = vmatpush1.bf16.msra.mxu0 %v2274
    %2308 = vmatprep.subr.bf16.mxu0 0
    %2309 = vmatpush1.bf16.msra.mxu0 %v2275
    %2310 = vmatprep.subr.bf16.mxu0 0
    %2311 = vmatpush1.bf16.msra.mxu0 %v2276
    %2312 = vmatprep.subr.bf16.mxu0 0
    %2313 = vmatpush1.bf16.msra.mxu0 %v2277
    %2314 = vmatprep.subr.bf16.mxu0 0
    %2315 = vmatpush1.bf16.msra.mxu0 %v2278
    %2316 = vmatprep.subr.bf16.mxu0 0
    %2317 = vmatpush1.bf16.msra.mxu0 %v2279
    %2318 = vmatprep.subr.bf16.mxu0 0
    %2319 = vmatpush1.bf16.msra.mxu0 %v2280
    %2320 = vmatprep.subr.bf16.mxu0 0
    %2321 = vmatpush1.bf16.msra.mxu0 %v2281
    %2322 = vmatprep.subr.bf16.mxu0 0
    %2323 = vmatpush1.bf16.msra.mxu0 %v2282
    %2324 = vmatprep.subr.bf16.mxu0 0
    %2325 = vmatpush1.bf16.msra.mxu0 %v2283
    %2326 = vmatprep.subr.bf16.mxu0 0
    %2327 = vmatpush1.bf16.msra.mxu0 %v2284
    %2328 = vmatprep.subr.bf16.mxu0 0
    %2329 = vmatpush1.bf16.msra.mxu0 %v2285
    %2330 = vmatprep.subr.bf16.mxu0 0
    %2331 = vmatpush1.bf16.msra.mxu0 %v2286
    %2332 = vmatprep.subr.bf16.mxu0 0
    %2333 = vmatpush1.bf16.msra.mxu0 %v2287
    %2334 = vmatprep.subr.bf16.mxu0 0
    %2335 = vmatpush1.bf16.msra.mxu0 %v2288
    %2336 = vmatprep.subr.bf16.mxu0 0
    %2337 = vmatpush1.bf16.msra.mxu0 %v2289
    %2338 = vmatprep.mubr.bf16.mxu0 %v2170
    %2339 = vmatmul.mubr.bf16.gmra.mrb[0].mxu0 %v2169
    %v2340 = vpop.f32.mrb[0].mxu0
    %v2341 = vadd.f32 %v2208, %v2340
    %v2342 = vpop.f32.mrb[0].mxu0
    %v2343 = vpop.f32.mrb[0].mxu0
    %v2344 = vadd.f32 %v2208, %v2343
    %v2345 = vpop.f32.mrb[0].mxu0
    %2346 = vdwg.mxu0
    %v2347 = vlaneseq
    %v2348 = vand.u32 %v2347, 127
    %vm2349 = vcmp.lt.s32.totalorder %v2348, 10
    %v2350 = vsel %vm2349, %v2341, -1e+30
    %v2351 = vsel %vm2349, %v2344, -1e+30
    %2352 = vmax.xlane.f32.xlu0 %v2350
    %v2353 = vpop.xlane.xlu0 %2352
    %2354 = vmax.xlane.f32.xlu0 %v2351
    %v2355 = vpop.xlane.xlu0 %2354
    %v2356 = vsub.f32 %v2350, %v2353
    %v2357 = vsub.f32 %v2351, %v2355
    %v2358 = vmul.f32 %v2356, 1.442695
    %v2359 = vpow.pop %v2358
    %v2360 = vmul.f32 %v2357, 1.442695
    %v2361 = vpow.pop %v2360
    %2362 = vadd.xlane.f32.xlu0 %v2359
    %v2363 = vpop.xlane.xlu0 %2362
    %2364 = vadd.xlane.f32.xlu0 %v2361
    %v2365 = vpop.xlane.xlu0 %2364
    %v2366 = vlog2.pop %v2363
    %v2367 = vmul.f32 %v2366, 0.6931472
    %v2368 = vlog2.pop %v2365
    %v2369 = vmul.f32 %v2368, 0.6931472
    %v2370 = vsub.f32 %v2356, %v2367
    %v2371 = vsub.f32 %v2357, %v2369
    %2372 = vst [vmem:[#allocation10] sm:$0xff] %v2370
    %2373 = vst [vmem:[#allocation10 + $0x8] sm:$0xff] %v2371
    // Predicated region
    $region46: #{tpu_custom_call.1} parent=1 // pred_check
      _
    $region47: #{tpu_custom_call.1} parent=1 // pred_check_branch
      %2375 = sbr.rel (0) target = $region49
    $region48: #{tpu_custom_call.1} parent=1 // pred_region
      %s2377 = ssub.s32 256, 32
      %2378 = vsyncadd [#allocation4], %s2377
      %s2379 = sshll.u32 [#allocation10], 4
      %s2380 = int_to_ptr.vmem [resolvable:$true] %s2379
      %2385 = dma.vmem_to_hbm [thread:$0]  %s2380, 32, %s7, [#allocation4], 32, 32, 2
    $region49: #{tpu_custom_call.1} parent=1 // pred_fallthru
      _
    // Predicated region
    $region50: #{tpu_custom_call.1} parent=1 // pred_check
      _
    $region51: #{tpu_custom_call.1} parent=1 // pred_check_branch
      %2387 = sbr.rel (0) target = $region53
    $region52: #{tpu_custom_call.1} parent=1 // pred_region
      %2388 = dma.done [#allocation4], 256
    $region53: #{tpu_custom_call.1} parent=1 // pred_fallthru
      _
    %2389 = vsyncpa [#allocation3], 1
    %2390 = vsyncpa [#allocation6], 1
    %2391 = vsyncpa [#allocation9], 1
    %2392 = vsyncpa [#allocation4], 1

</llo_original>
